<compile_context>
chip_gen: v7x
topology: tpu7x:2x2x1
jax: 0.10.0
libtpu: 0.0.40
codegen_flags: <defaults>
</compile_context>

<pallas_src>
import math

import jax
import jax.numpy as jnp
from jax.experimental import pallas as pl
from jax.experimental.pallas import tpu as pltpu


def _round_up(x, m):
    return (x + m - 1) // m * m


def actor_kernel(obs_ref, act_ref,
                 w1_ref, b1_ref, w2_ref, b2_ref, w3p_ref, b3p_ref,
                 inv_std_ref, logp_const_ref,
                 out_ref):
    """One batch tile.

    Packed lane-dense output:
      out_ref[:, :act_dim]   = mean
      out_ref[:, act_dim]    = logp_a (summed over action dims)
      out_ref[:, act_dim+1:] = 0
    """
    # --- 3-layer tanh MLP (MXU matmuls, f32 accumulation; tanh on the EUP) ---
    h1 = jnp.tanh(
        jnp.dot(obs_ref[...], w1_ref[...], preferred_element_type=jnp.float32)
        + b1_ref[...])
    h2 = jnp.tanh(
        jnp.dot(h1, w2_ref[...], preferred_element_type=jnp.float32)
        + b2_ref[...])
    # w3/b3 are zero-padded to the full lane width, so lanes >= act_dim are 0.
    mu_full = (jnp.dot(h2, w3p_ref[...], preferred_element_type=jnp.float32)
               + b3p_ref[...])                                  # [TB, LANES]

    # --- Gaussian log-prob epilogue (constants hoisted to the wrapper) ---
    act_dim = act_ref.shape[-1]
    mu = mu_full[:, :act_dim]                                   # [TB, A]
    z = (act_ref[...] - mu) * inv_std_ref[...]                  # [TB, A]
    logp = (-0.5 * jnp.sum(z * z, axis=-1, keepdims=True)
            + logp_const_ref[...])                              # [TB, 1]

    # Drop logp into lane `act_dim` of the (zero there) mean slab so the
    # output store is a single full-width unmasked store.
    lanes = jax.lax.broadcasted_iota(jnp.int32, (1, mu_full.shape[-1]), 1)
    logp_slot = jnp.where(lanes == act_dim, 1.0, 0.0)           # [1, LANES]
    out_ref[...] = mu_full + logp * logp_slot


def actor_forward(obs, act, params, *, block_b=512):
    """Gaussian MLP actor forward: returns ((mean, log_std), logp_a)."""
    obs = jnp.asarray(obs, jnp.float32)
    B, obs_dim = obs.shape
    hidden = params["w1"].shape[1]
    act_dim = params["w3"].shape[1]
    log_std = params["log_std"]

    has_act = act is not None
    if not has_act:
        act = jnp.zeros((B, act_dim), jnp.float32)
    act = jnp.asarray(act, jnp.float32)

    # Lane-dense packed output: mean in lanes [0:A), logp in lane A.
    lanes = max(128, _round_up(act_dim + 1, 128))

    # Batch tile: multiple of 8 sublanes, capped at block_b; pad B up to it.
    tb = min(_round_up(block_b, 8), _round_up(B, 8))
    bp = _round_up(B, tb)
    if bp != B:
        pad_rows = ((0, bp - B), (0, 0))
        obs = jnp.pad(obs, pad_rows)
        act = jnp.pad(act, pad_rows)

    # Host-side constant hoisting (done once, not per grid step).
    w3p = jnp.pad(params["w3"], ((0, 0), (0, lanes - act_dim)))
    b3p = jnp.pad(params["b3"], ((0, 0), (0, lanes - act_dim)))
    inv_std = jnp.exp(-log_std)                                         # [1, A]
    logp_const = (jnp.sum(-log_std, axis=-1, keepdims=True)
                  - 0.5 * act_dim * math.log(2.0 * math.pi))            # [1, 1]

    grid = (bp // tb,)

    def tiled(shape):
        return pl.BlockSpec((tb, shape[1]), lambda i: (i, 0))

    def resident(shape):
        return pl.BlockSpec(shape, lambda i: (0, 0))

    flops = 2 * bp * (obs_dim * hidden + hidden * hidden + hidden * lanes)
    bytes_accessed = 4 * (bp * (obs_dim + act_dim + lanes)
                          + obs_dim * hidden + hidden * hidden
                          + hidden * lanes + 2 * hidden + 2 * lanes
                          + act_dim + 1)
    cost = pl.CostEstimate(flops=flops,
                           transcendentals=2 * bp * hidden,
                           bytes_accessed=bytes_accessed)

    packed = pl.pallas_call(
        actor_kernel,
        out_shape=jax.ShapeDtypeStruct((bp, lanes), jnp.float32),
        grid=grid,
        in_specs=[
            tiled(obs.shape),                 # obs        [tb, obs_dim]
            tiled(act.shape),                 # act        [tb, act_dim]
            resident(params["w1"].shape),     # w1         (VMEM-resident)
            resident(params["b1"].shape),     # b1
            resident(params["w2"].shape),     # w2
            resident(params["b2"].shape),     # b2
            resident(w3p.shape),              # w3 padded to `lanes`
            resident(b3p.shape),              # b3 padded to `lanes`
            resident(inv_std.shape),          # exp(-log_std)
            resident(logp_const.shape),       # hoisted log-prob constant
        ],
        out_specs=pl.BlockSpec((tb, lanes), lambda i: (i, 0)),
        compiler_params=pltpu.CompilerParams(
            dimension_semantics=("parallel",)),
        cost_estimate=cost,
    )(obs, act,
      params["w1"], params["b1"],
      params["w2"], params["b2"],
      w3p, b3p, inv_std, logp_const)

    mean = packed[:B, :act_dim]
    logp_a = packed[:B, act_dim] if has_act else None
    pi = (mean, log_std)   # Normal(mean, exp(log_std)) parameters
    return pi, logp_a


def init_params(key, obs_dim, hidden, act_dim):
    """Deterministic kaiming-uniform-style init (matches weight_initialization)."""
    ks = jax.random.split(key, 3)

    def kaiming_uniform(k, fan_in, shape):
        bound = math.sqrt(6.0 / fan_in)
        return jax.random.uniform(k, shape, jnp.float32, -bound, bound)

    return {
        "w1": kaiming_uniform(ks[0], obs_dim, (obs_dim, hidden)),
        "b1": jnp.zeros((1, hidden), jnp.float32),
        "w2": kaiming_uniform(ks[1], hidden, (hidden, hidden)),
        "b2": jnp.zeros((1, hidden), jnp.float32),
        "w3": kaiming_uniform(ks[2], hidden, (hidden, act_dim)),
        "b3": jnp.zeros((1, act_dim), jnp.float32),
        "log_std": jnp.full((1, act_dim), -0.5, jnp.float32),
    }


def reference_forward(obs, act, params):
    h1 = jnp.tanh(obs @ params["w1"] + params["b1"])
    h2 = jnp.tanh(h1 @ params["w2"] + params["b2"])
    mu = h2 @ params["w3"] + params["b3"]
    log_std = params["log_std"]
    z = (act - mu) * jnp.exp(-log_std)
    per_dim = -0.5 * z * z - log_std - 0.5 * math.log(2.0 * math.pi)
    return mu, jnp.sum(per_dim, axis=-1)


if __name__ == "__main__":
    obs_dim, act_dim, hidden = 16, 8, 32

    key = jax.random.PRNGKey(0)
    k_param, k_data = jax.random.split(key)
    params = init_params(k_param, obs_dim, hidden, act_dim)

    # Three cases: multi-tile pipelined grid, ragged batch (padding), tiny batch.
    for batch, blk in ((1024, 256), (200, 512), (8, 512)):
        k_obs, k_act = jax.random.split(jax.random.fold_in(k_data, batch))
        obs = jax.random.normal(k_obs, (batch, obs_dim), jnp.float32)
        act = jax.random.normal(k_act, (batch, act_dim), jnp.float32)

        (mean, log_std), logp = actor_forward(obs, act, params, block_b=blk)
        jax.block_until_ready((mean, logp))

        ref_mean, ref_logp = reference_forward(obs, act, params)
        assert mean.shape == (batch, act_dim)
        assert logp.shape == (batch,)
        assert jnp.allclose(mean, ref_mean, atol=1e-5, rtol=1e-5)
        assert jnp.allclose(logp, ref_logp, atol=1e-4, rtol=1e-5)

        # act=None path of Actor.forward: only the distribution is returned.
        (mean_only, _), logp_none = actor_forward(obs, None, params, block_b=blk)
        jax.block_until_ready(mean_only)
        assert logp_none is None
        assert jnp.allclose(mean_only, ref_mean, atol=1e-5, rtol=1e-5)

    print("KERNEL_OK")
</pallas_src>

<mosaic_0001>
module attributes {stable_mosaic.version = 11 : i64} {
  func.func @actor_kernel(%arg0: i32, %arg1: memref<256x16xf32, #tpu.memory_space<vmem>>, %arg2: memref<256x8xf32, #tpu.memory_space<vmem>>, %arg3: memref<16x32xf32, #tpu.memory_space<vmem>>, %arg4: memref<1x32xf32, #tpu.memory_space<vmem>>, %arg5: memref<32x32xf32, #tpu.memory_space<vmem>>, %arg6: memref<1x32xf32, #tpu.memory_space<vmem>>, %arg7: memref<32x128xf32, #tpu.memory_space<vmem>>, %arg8: memref<1x128xf32, #tpu.memory_space<vmem>>, %arg9: memref<1x8xf32, #tpu.memory_space<vmem>>, %arg10: memref<1x1xf32, #tpu.memory_space<vmem>>, %arg11: memref<256x128xf32, #tpu.memory_space<vmem>>) attributes {dimension_semantics = [#tpu.dimension_semantics<parallel>], iteration_bounds = array<i64: 4>, scalar_prefetch = 0 : i64, scratch_operands = 0 : i64, tpu.core_type = #tpu.core_type<tc>, window_params = [{transform_indices = @transform_0, window_bounds = array<i64: 256, 16>}, {transform_indices = @transform_1, window_bounds = array<i64: 256, 8>}, {pipeline_mode = #tpu.pipeline_mode<synchronous>, transform_indices = @transform_2, window_bounds = array<i64: 16, 32>}, {pipeline_mode = #tpu.pipeline_mode<synchronous>, transform_indices = @transform_3, window_bounds = array<i64: 1, 32>}, {pipeline_mode = #tpu.pipeline_mode<synchronous>, transform_indices = @transform_4, window_bounds = array<i64: 32, 32>}, {pipeline_mode = #tpu.pipeline_mode<synchronous>, transform_indices = @transform_5, window_bounds = array<i64: 1, 32>}, {pipeline_mode = #tpu.pipeline_mode<synchronous>, transform_indices = @transform_6, window_bounds = array<i64: 32, 128>}, {pipeline_mode = #tpu.pipeline_mode<synchronous>, transform_indices = @transform_7, window_bounds = array<i64: 1, 128>}, {pipeline_mode = #tpu.pipeline_mode<synchronous>, transform_indices = @transform_8, window_bounds = array<i64: 1, 8>}, {pipeline_mode = #tpu.pipeline_mode<synchronous>, transform_indices = @transform_9, window_bounds = array<i64: 1, 1>}, {transform_indices = @transform_10, window_bounds = array<i64: 256, 128>}]} {
    %c0 = arith.constant 0 : index
    %c0_0 = arith.constant 0 : index
    %0 = vector.load %arg1[%c0, %c0_0] : memref<256x16xf32, #tpu.memory_space<vmem>>, vector<256x16xf32>
    %c0_1 = arith.constant 0 : index
    %c0_2 = arith.constant 0 : index
    %1 = vector.load %arg3[%c0_1, %c0_2] : memref<16x32xf32, #tpu.memory_space<vmem>>, vector<16x32xf32>
    %cst = arith.constant dense<0.000000e+00> : vector<256x32xf32>
    %2 = tpu.matmul %0, %1, %cst {dimension_numbers = #tpu.dot_dimension_numbers<[1], [0], [0], [1], [0, 0, 1, 1], [], []>} : vector<256x16xf32>, vector<16x32xf32>, vector<256x32xf32> -> vector<256x32xf32>
    %c0_3 = arith.constant 0 : index
    %c0_4 = arith.constant 0 : index
    %3 = vector.load %arg4[%c0_3, %c0_4] : memref<1x32xf32, #tpu.memory_space<vmem>>, vector<1x32xf32>
    %4 = vector.broadcast %3 : vector<1x32xf32> to vector<256x32xf32>
    %5 = arith.addf %2, %4 : vector<256x32xf32>
    %6 = math.tanh %5 : vector<256x32xf32>
    %c0_5 = arith.constant 0 : index
    %c0_6 = arith.constant 0 : index
    %7 = vector.load %arg5[%c0_5, %c0_6] : memref<32x32xf32, #tpu.memory_space<vmem>>, vector<32x32xf32>
    %cst_7 = arith.constant dense<0.000000e+00> : vector<256x32xf32>
    %8 = tpu.matmul %6, %7, %cst_7 {dimension_numbers = #tpu.dot_dimension_numbers<[1], [0], [0], [1], [0, 0, 1, 1], [], []>} : vector<256x32xf32>, vector<32x32xf32>, vector<256x32xf32> -> vector<256x32xf32>
    %c0_8 = arith.constant 0 : index
    %c0_9 = arith.constant 0 : index
    %9 = vector.load %arg6[%c0_8, %c0_9] : memref<1x32xf32, #tpu.memory_space<vmem>>, vector<1x32xf32>
    %10 = vector.broadcast %9 : vector<1x32xf32> to vector<256x32xf32>
    %11 = arith.addf %8, %10 : vector<256x32xf32>
    %12 = math.tanh %11 : vector<256x32xf32>
    %c0_10 = arith.constant 0 : index
    %c0_11 = arith.constant 0 : index
    %13 = vector.load %arg7[%c0_10, %c0_11] : memref<32x128xf32, #tpu.memory_space<vmem>>, vector<32x128xf32>
    %cst_12 = arith.constant dense<0.000000e+00> : vector<256x128xf32>
    %14 = tpu.matmul %12, %13, %cst_12 {dimension_numbers = #tpu.dot_dimension_numbers<[1], [0], [0], [1], [0, 0, 1, 1], [], []>} : vector<256x32xf32>, vector<32x128xf32>, vector<256x128xf32> -> vector<256x128xf32>
    %c0_13 = arith.constant 0 : index
    %c0_14 = arith.constant 0 : index
    %15 = vector.load %arg8[%c0_13, %c0_14] : memref<1x128xf32, #tpu.memory_space<vmem>>, vector<1x128xf32>
    %16 = vector.broadcast %15 : vector<1x128xf32> to vector<256x128xf32>
    %17 = arith.addf %14, %16 : vector<256x128xf32>
    %18 = vector.extract_strided_slice %17 {offsets = [0, 0], sizes = [256, 8], strides = [1, 1]} : vector<256x128xf32> to vector<256x8xf32>
    %c0_15 = arith.constant 0 : index
    %c0_16 = arith.constant 0 : index
    %19 = vector.load %arg2[%c0_15, %c0_16] : memref<256x8xf32, #tpu.memory_space<vmem>>, vector<256x8xf32>
    %20 = arith.subf %19, %18 : vector<256x8xf32>
    %c0_17 = arith.constant 0 : index
    %c0_18 = arith.constant 0 : index
    %21 = vector.load %arg9[%c0_17, %c0_18] : memref<1x8xf32, #tpu.memory_space<vmem>>, vector<1x8xf32>
    %22 = vector.broadcast %21 : vector<1x8xf32> to vector<256x8xf32>
    %23 = arith.mulf %20, %22 : vector<256x8xf32>
    %24 = arith.mulf %23, %23 : vector<256x8xf32>
    %cst_19 = arith.constant dense<0.000000e+00> : vector<256xf32>
    %25 = vector.multi_reduction <add>, %24, %cst_19 [1] : vector<256x8xf32> to vector<256xf32>
    %26 = vector.shape_cast %25 : vector<256xf32> to vector<256x1xf32>
    %cst_20 = arith.constant -5.000000e-01 : f32
    %27 = vector.broadcast %cst_20 : f32 to vector<256x1xf32>
    %28 = arith.mulf %27, %26 : vector<256x1xf32>
    %c0_21 = arith.constant 0 : index
    %c0_22 = arith.constant 0 : index
    %29 = vector.load %arg10[%c0_21, %c0_22] : memref<1x1xf32, #tpu.memory_space<vmem>>, vector<1x1xf32>
    %30 = vector.broadcast %29 : vector<1x1xf32> to vector<256x1xf32>
    %31 = arith.addf %28, %30 : vector<256x1xf32>
    %32 = tpu.iota {dimensions = array<i32: 1>} : vector<1x128xi32>
    %c8_i32 = arith.constant 8 : i32
    %33 = vector.broadcast %c8_i32 : i32 to vector<1x128xi32>
    %34 = arith.cmpi eq, %32, %33 : vector<1x128xi32>
    %cst_23 = arith.constant 1.000000e+00 : f32
    %cst_24 = arith.constant 0.000000e+00 : f32
    %35 = vector.broadcast %cst_23 : f32 to vector<1x128xf32>
    %36 = vector.broadcast %cst_24 : f32 to vector<1x128xf32>
    %37 = arith.select %34, %35, %36 : vector<1x128xi1>, vector<1x128xf32>
    %38 = vector.broadcast %31 : vector<256x1xf32> to vector<256x128xf32>
    %39 = vector.broadcast %37 : vector<1x128xf32> to vector<256x128xf32>
    %40 = arith.mulf %38, %39 : vector<256x128xf32>
    %41 = arith.addf %17, %40 : vector<256x128xf32>
    %c0_25 = arith.constant 0 : index
    %c0_26 = arith.constant 0 : index
    %42 = vector.load %arg11[%c0_25, %c0_26] : memref<256x128xf32, #tpu.memory_space<vmem>>, vector<256x128xf32>
    tpu.vector_store %arg11[%c0_25, %c0_26], %41 {strides = array<i32>} : memref<256x128xf32, #tpu.memory_space<vmem>>, vector<256x128xf32>,
    return
  }
  func.func @transform_0(%arg0: i32) -> (i32, i32) {
    %c0_i32 = arith.constant 0 : i32
    %c0_i32_0 = arith.constant 0 : i32
    return %arg0, %c0_i32 : i32, i32
  }
  func.func @transform_1(%arg0: i32) -> (i32, i32) {
    %c0_i32 = arith.constant 0 : i32
    %c0_i32_0 = arith.constant 0 : i32
    return %arg0, %c0_i32 : i32, i32
  }
  func.func @transform_2(%arg0: i32) -> (i32, i32) {
    %c0_i32 = arith.constant 0 : i32
    %c0_i32_0 = arith.constant 0 : i32
    %c0_i32_1 = arith.constant 0 : i32
    return %c0_i32, %c0_i32_0 : i32, i32
  }
  func.func @transform_3(%arg0: i32) -> (i32, i32) {
    %c0_i32 = arith.constant 0 : i32
    %c0_i32_0 = arith.constant 0 : i32
    %c0_i32_1 = arith.constant 0 : i32
    return %c0_i32, %c0_i32_0 : i32, i32
  }
  func.func @transform_4(%arg0: i32) -> (i32, i32) {
    %c0_i32 = arith.constant 0 : i32
    %c0_i32_0 = arith.constant 0 : i32
    %c0_i32_1 = arith.constant 0 : i32
    return %c0_i32, %c0_i32_0 : i32, i32
  }
  func.func @transform_5(%arg0: i32) -> (i32, i32) {
    %c0_i32 = arith.constant 0 : i32
    %c0_i32_0 = arith.constant 0 : i32
    %c0_i32_1 = arith.constant 0 : i32
    return %c0_i32, %c0_i32_0 : i32, i32
  }
  func.func @transform_6(%arg0: i32) -> (i32, i32) {
    %c0_i32 = arith.constant 0 : i32
    %c0_i32_0 = arith.constant 0 : i32
    %c0_i32_1 = arith.constant 0 : i32
    return %c0_i32, %c0_i32_0 : i32, i32
  }
  func.func @transform_7(%arg0: i32) -> (i32, i32) {
    %c0_i32 = arith.constant 0 : i32
    %c0_i32_0 = arith.constant 0 : i32
    %c0_i32_1 = arith.constant 0 : i32
    return %c0_i32, %c0_i32_0 : i32, i32
  }
  func.func @transform_8(%arg0: i32) -> (i32, i32) {
    %c0_i32 = arith.constant 0 : i32
    %c0_i32_0 = arith.constant 0 : i32
    %c0_i32_1 = arith.constant 0 : i32
    return %c0_i32, %c0_i32_0 : i32, i32
  }
  func.func @transform_9(%arg0: i32) -> (i32, i32) {
    %c0_i32 = arith.constant 0 : i32
    %c0_i32_0 = arith.constant 0 : i32
    %c0_i32_1 = arith.constant 0 : i32
    return %c0_i32, %c0_i32_0 : i32, i32
  }
  func.func @transform_10(%arg0: i32) -> (i32, i32) {
    %c0_i32 = arith.constant 0 : i32
    %c0_i32_0 = arith.constant 0 : i32
    return %arg0, %c0_i32 : i32, i32
  }
}

</mosaic_0001>

<llo_original>
// kernel: tpu_custom_call.1
$region0: #{tpu_custom_call.1}
  #allocation0 [shape = 'u32[]', space=smem, size = 0x4, offset = 0x4, fixed_abs, tag = 'smem constant byte address 0x4 - core index']
  #allocation1 [shape = 'u32[144,128]{1,0:T(1,128)}', space=vmem, size = 0x12000, scoped, tag = 'internal scratch']
  #allocation2 [shape = 'f32[1,1]{1,0:T(1,128)S(1)}', space=vmem, size = 0x200, scoped, tag = 'scoped memory for tpu_custom_call.1']
  %s0 = inlined_call_operand.vmem [shape: f32[1024,16], index: 0, kind: input, shape index: {}]
  %s1 = inlined_call_operand.vmem [shape: f32[1024,8], index: 1, kind: input, shape index: {}]
  %s2 = inlined_call_operand.vmem [shape: f32[16,32], index: 2, kind: input, shape index: {}]
  %s3 = inlined_call_operand.vmem [shape: f32[1,32], index: 3, kind: input, shape index: {}]
  %s4 = inlined_call_operand.vmem [shape: f32[32,32], index: 4, kind: input, shape index: {}]
  %s5 = inlined_call_operand.vmem [shape: f32[1,32], index: 5, kind: input, shape index: {}]
  %s6 = inlined_call_operand.vmem [shape: f32[32,128], index: 6, kind: input, shape index: {}]
  %s7 = inlined_call_operand.vmem [shape: f32[1,128], index: 7, kind: input, shape index: {}]
  %s8 = inlined_call_operand.vmem [shape: f32[1,8], index: 8, kind: input, shape index: {}]
  %s9 = inlined_call_operand.<no memory space> [shape: f32[1,1], index: 9, kind: input, shape index: {}]
  %s10 = inlined_call_operand.hbm [shape: f32[1024,128], index: 10, kind: output, shape index: {}]
  %s11 = sld [smem:[#allocation0]]
  $region73: #{tpu_custom_call.1} parent=0
    _
  %s13 = ssub.s32 1, %s11
  %s14 = scalar_select 0, %s13, %s11
  %v15 = vstv %s9
  %16 = vst [vmem:[#allocation2] sm:$0x1] %v15
  $region1: #{tpu_custom_call.1} parent=0
    #allocation3 [shape = 'u8[262144]{0}', space=vmem, size = 0x40000, scoped, tag = 'output window, operand 0']
    #allocation4 [shape = 's32[2]{0}', space=sflag, size = 0x8, scoped, tag = 'scoped memory for tpu_custom_call.1']
    %17 = vsyncpa [#allocation4], 0
    %s18 = scalar_lea.sflag [#allocation4], 1
    %19 = vsyncpa %s18, 0
    loop: start=0, step=1, limit=6
    $region2: #{tpu_custom_call.1} parent=1 // loop_pre_header
      _
    $region3: #{tpu_custom_call.1} parent=1 // loop_header
      %s21 = sphi 0, %s25
      %p22 = scmp.ge.s32.totalorder %s21, 6
      %s31 = sphi 0, %s33
      %s34 = sphi 0, %s31
      %s35 = sphi 0, %s34
      %s51 = sphi 0, %s35
      %s57 = sphi 0, %s59
      %s60 = sphi 0, %s57
      %s61 = sphi 0, %s60
      %s77 = sphi 0, %s61
      %s81 = sphi 0, %s81
      %s83 = sphi 0, %s81
      %s84 = sphi 0, %s83
      %s98 = sphi 0, %s84
      %s102 = sphi 0, %s102
      %s104 = sphi 0, %s102
      %s105 = sphi 0, %s104
      %s119 = sphi 0, %s105
      %s123 = sphi 0, %s123
      %s125 = sphi 0, %s123
      %s126 = sphi 0, %s125
      %s140 = sphi 0, %s126
      %s144 = sphi 0, %s144
      %s146 = sphi 0, %s144
      %s147 = sphi 0, %s146
      %s161 = sphi 0, %s147
      %s165 = sphi 0, %s165
      %s167 = sphi 0, %s165
      %s168 = sphi 0, %s167
      %s182 = sphi 0, %s168
      %s186 = sphi 0, %s186
      %s188 = sphi 0, %s186
      %s189 = sphi 0, %s188
      %s203 = sphi 0, %s189
      %s207 = sphi 0, %s207
      %s209 = sphi 0, %s207
      %s210 = sphi 0, %s209
      %s224 = sphi 0, %s210
      %s228 = sphi 0, %s228
      %s230 = sphi 0, %s228
      %s231 = sphi 0, %s230
      %s245 = sphi 0, %s231
      %s251 = sphi 0, %s253
      %s254 = sphi 0, %s251
      %s255 = sphi 0, %s254
      %s271 = sphi 0, %s255
    $region4: #{tpu_custom_call.1} parent=1 // loop_header_branch
      %24 = sbr.rel (%p22) target = $region8
    $region5: #{tpu_custom_call.1} parent=1 // loop_body
      %s26 = ssub.s32 %s21, 1
      %s27 = ssub.s32 %s21, 2
      %s28 = sadd.s32 %s21, 1
      %s29 = ssub.s32 %s21, %s28
      %p30 = scmp.eq.s32.totalorder %s29, 0
      %s32 = sadd.s32 %s31, 1
      %s33 = scalar_select %p30, %s31, %s32
      %p36 = pneg %p30
      %p37 = scmp.eq.s32.totalorder %s21, 3
      %p38 = por %p36, %p37
      %p39 = scmp.ne.s32.totalorder %s31, %s34
      %p40 = scmp.eq.s32.totalorder %s21, 0
      %p41 = por %p39, %p40
      %p42 = scmp.ne.s32.totalorder %s31, %s34
      %p43 = scmp.eq.s32.totalorder %s26, 3
      %p44 = por %p42, %p43
      %p45 = scmp.ne.s32.totalorder %s34, %s35
      %p46 = scmp.eq.s32.totalorder %s26, 0
      %p47 = por %p45, %p46
      %p48 = scmp.ne.s32.totalorder %s34, %s35
      %p49 = scmp.eq.s32.totalorder %s27, 3
      %p50 = por %p48, %p49
      %p52 = scmp.ne.s32.totalorder %s35, %s51
      %p53 = scmp.eq.s32.totalorder %s27, 0
      %p54 = por %p52, %p53
      %s55 = ssub.s32 %s21, %s28
      %p56 = scmp.eq.s32.totalorder %s55, 0
      %s58 = sadd.s32 %s57, 1
      %s59 = scalar_select %p56, %s57, %s58
      %p62 = pneg %p56
      %p63 = scmp.eq.s32.totalorder %s21, 3
      %p64 = por %p62, %p63
      %p65 = scmp.ne.s32.totalorder %s57, %s60
      %p66 = scmp.eq.s32.totalorder %s21, 0
      %p67 = por %p65, %p66
      %p68 = scmp.ne.s32.totalorder %s57, %s60
      %p69 = scmp.eq.s32.totalorder %s26, 3
      %p70 = por %p68, %p69
      %p71 = scmp.ne.s32.totalorder %s60, %s61
      %p72 = scmp.eq.s32.totalorder %s26, 0
      %p73 = por %p71, %p72
      %p74 = scmp.ne.s32.totalorder %s60, %s61
      %p75 = scmp.eq.s32.totalorder %s27, 3
      %p76 = por %p74, %p75
      %p78 = scmp.ne.s32.totalorder %s61, %s77
      %p79 = scmp.eq.s32.totalorder %s27, 0
      %p80 = por %p78, %p79
      %s82 = sadd.s32 %s81, 1
      %p85 = scmp.eq.s32.totalorder %s21, 3
      %p86 = scmp.ne.s32.totalorder %s81, %s83
      %p87 = scmp.eq.s32.totalorder %s21, 0
      %p88 = por %p86, %p87
      %p89 = scmp.ne.s32.totalorder %s81, %s83
      %p90 = scmp.eq.s32.totalorder %s26, 3
      %p91 = por %p89, %p90
      %p92 = scmp.ne.s32.totalorder %s83, %s84
      %p93 = scmp.eq.s32.totalorder %s26, 0
      %p94 = por %p92, %p93
      %p95 = scmp.ne.s32.totalorder %s83, %s84
      %p96 = scmp.eq.s32.totalorder %s27, 3
      %p97 = por %p95, %p96
      %p99 = scmp.ne.s32.totalorder %s84, %s98
      %p100 = scmp.eq.s32.totalorder %s27, 0
      %p101 = por %p99, %p100
      %s103 = sadd.s32 %s102, 1
      %p106 = scmp.eq.s32.totalorder %s21, 3
      %p107 = scmp.ne.s32.totalorder %s102, %s104
      %p108 = scmp.eq.s32.totalorder %s21, 0
      %p109 = por %p107, %p108
      %p110 = scmp.ne.s32.totalorder %s102, %s104
      %p111 = scmp.eq.s32.totalorder %s26, 3
      %p112 = por %p110, %p111
      %p113 = scmp.ne.s32.totalorder %s104, %s105
      %p114 = scmp.eq.s32.totalorder %s26, 0
      %p115 = por %p113, %p114
      %p116 = scmp.ne.s32.totalorder %s104, %s105
      %p117 = scmp.eq.s32.totalorder %s27, 3
      %p118 = por %p116, %p117
      %p120 = scmp.ne.s32.totalorder %s105, %s119
      %p121 = scmp.eq.s32.totalorder %s27, 0
      %p122 = por %p120, %p121
      %s124 = sadd.s32 %s123, 1
      %p127 = scmp.eq.s32.totalorder %s21, 3
      %p128 = scmp.ne.s32.totalorder %s123, %s125
      %p129 = scmp.eq.s32.totalorder %s21, 0
      %p130 = por %p128, %p129
      %p131 = scmp.ne.s32.totalorder %s123, %s125
      %p132 = scmp.eq.s32.totalorder %s26, 3
      %p133 = por %p131, %p132
      %p134 = scmp.ne.s32.totalorder %s125, %s126
      %p135 = scmp.eq.s32.totalorder %s26, 0
      %p136 = por %p134, %p135
      %p137 = scmp.ne.s32.totalorder %s125, %s126
      %p138 = scmp.eq.s32.totalorder %s27, 3
      %p139 = por %p137, %p138
      %p141 = scmp.ne.s32.totalorder %s126, %s140
      %p142 = scmp.eq.s32.totalorder %s27, 0
      %p143 = por %p141, %p142
      %s145 = sadd.s32 %s144, 1
      %p148 = scmp.eq.s32.totalorder %s21, 3
      %p149 = scmp.ne.s32.totalorder %s144, %s146
      %p150 = scmp.eq.s32.totalorder %s21, 0
      %p151 = por %p149, %p150
      %p152 = scmp.ne.s32.totalorder %s144, %s146
      %p153 = scmp.eq.s32.totalorder %s26, 3
      %p154 = por %p152, %p153
      %p155 = scmp.ne.s32.totalorder %s146, %s147
      %p156 = scmp.eq.s32.totalorder %s26, 0
      %p157 = por %p155, %p156
      %p158 = scmp.ne.s32.totalorder %s146, %s147
      %p159 = scmp.eq.s32.totalorder %s27, 3
      %p160 = por %p158, %p159
      %p162 = scmp.ne.s32.totalorder %s147, %s161
      %p163 = scmp.eq.s32.totalorder %s27, 0
      %p164 = por %p162, %p163
      %s166 = sadd.s32 %s165, 1
      %p169 = scmp.eq.s32.totalorder %s21, 3
      %p170 = scmp.ne.s32.totalorder %s165, %s167
      %p171 = scmp.eq.s32.totalorder %s21, 0
      %p172 = por %p170, %p171
      %p173 = scmp.ne.s32.totalorder %s165, %s167
      %p174 = scmp.eq.s32.totalorder %s26, 3
      %p175 = por %p173, %p174
      %p176 = scmp.ne.s32.totalorder %s167, %s168
      %p177 = scmp.eq.s32.totalorder %s26, 0
      %p178 = por %p176, %p177
      %p179 = scmp.ne.s32.totalorder %s167, %s168
      %p180 = scmp.eq.s32.totalorder %s27, 3
      %p181 = por %p179, %p180
      %p183 = scmp.ne.s32.totalorder %s168, %s182
      %p184 = scmp.eq.s32.totalorder %s27, 0
      %p185 = por %p183, %p184
      %s187 = sadd.s32 %s186, 1
      %p190 = scmp.eq.s32.totalorder %s21, 3
      %p191 = scmp.ne.s32.totalorder %s186, %s188
      %p192 = scmp.eq.s32.totalorder %s21, 0
      %p193 = por %p191, %p192
      %p194 = scmp.ne.s32.totalorder %s186, %s188
      %p195 = scmp.eq.s32.totalorder %s26, 3
      %p196 = por %p194, %p195
      %p197 = scmp.ne.s32.totalorder %s188, %s189
      %p198 = scmp.eq.s32.totalorder %s26, 0
      %p199 = por %p197, %p198
      %p200 = scmp.ne.s32.totalorder %s188, %s189
      %p201 = scmp.eq.s32.totalorder %s27, 3
      %p202 = por %p200, %p201
      %p204 = scmp.ne.s32.totalorder %s189, %s203
      %p205 = scmp.eq.s32.totalorder %s27, 0
      %p206 = por %p204, %p205
      %s208 = sadd.s32 %s207, 1
      %p211 = scmp.eq.s32.totalorder %s21, 3
      %p212 = scmp.ne.s32.totalorder %s207, %s209
      %p213 = scmp.eq.s32.totalorder %s21, 0
      %p214 = por %p212, %p213
      %p215 = scmp.ne.s32.totalorder %s207, %s209
      %p216 = scmp.eq.s32.totalorder %s26, 3
      %p217 = por %p215, %p216
      %p218 = scmp.ne.s32.totalorder %s209, %s210
      %p219 = scmp.eq.s32.totalorder %s26, 0
      %p220 = por %p218, %p219
      %p221 = scmp.ne.s32.totalorder %s209, %s210
      %p222 = scmp.eq.s32.totalorder %s27, 3
      %p223 = por %p221, %p222
      %p225 = scmp.ne.s32.totalorder %s210, %s224
      %p226 = scmp.eq.s32.totalorder %s27, 0
      %p227 = por %p225, %p226
      %s229 = sadd.s32 %s228, 1
      %p232 = scmp.eq.s32.totalorder %s21, 3
      %p233 = scmp.ne.s32.totalorder %s228, %s230
      %p234 = scmp.eq.s32.totalorder %s21, 0
      %p235 = por %p233, %p234
      %p236 = scmp.ne.s32.totalorder %s228, %s230
      %p237 = scmp.eq.s32.totalorder %s26, 3
      %p238 = por %p236, %p237
      %p239 = scmp.ne.s32.totalorder %s230, %s231
      %p240 = scmp.eq.s32.totalorder %s26, 0
      %p241 = por %p239, %p240
      %p242 = scmp.ne.s32.totalorder %s230, %s231
      %p243 = scmp.eq.s32.totalorder %s27, 3
      %p244 = por %p242, %p243
      %p246 = scmp.ne.s32.totalorder %s231, %s245
      %p247 = scmp.eq.s32.totalorder %s27, 0
      %p248 = por %p246, %p247
      %s249 = ssub.s32 %s21, %s28
      %p250 = scmp.eq.s32.totalorder %s249, 0
      %s252 = sadd.s32 %s251, 1
      %s253 = scalar_select %p250, %s251, %s252
      %p256 = pneg %p250
      %p257 = scmp.eq.s32.totalorder %s21, 3
      %p258 = por %p256, %p257
      %p259 = scmp.ne.s32.totalorder %s251, %s254
      %p260 = scmp.eq.s32.totalorder %s21, 0
      %p261 = por %p259, %p260
      %p262 = scmp.ne.s32.totalorder %s251, %s254
      %p263 = scmp.eq.s32.totalorder %s26, 3
      %p264 = por %p262, %p263
      %p265 = scmp.ne.s32.totalorder %s254, %s255
      %p266 = scmp.eq.s32.totalorder %s26, 0
      %p267 = por %p265, %p266
      %p268 = scmp.ne.s32.totalorder %s254, %s255
      %p269 = scmp.eq.s32.totalorder %s27, 3
      %p270 = por %p268, %p269
      %p272 = scmp.ne.s32.totalorder %s255, %s271
      %p273 = scmp.eq.s32.totalorder %s27, 0
      %p274 = por %p272, %p273
      %p275 = scmp.le.s32.totalorder 1, %s21
      %p276 = scmp.lt.s32.totalorder %s21, 5
      %p277 = pnand %p275, %p276
      %p278 = pneg %p277
      // Predicated region
      $region9: #{tpu_custom_call.1} parent=5 // pred_check
        _
      $region10: #{tpu_custom_call.1} parent=5 // pred_check_branch
        %280 = sbr.rel (%p277) target = $region12
      $region11: #{tpu_custom_call.1} parent=5 // pred_region
        %s281 = ssub.s32 %s21, 1
        // Predicated region
        $region13: #{tpu_custom_call.1} parent=11 // pred_check
          %p282 = pneg %p94
        $region14: #{tpu_custom_call.1} parent=11 // pred_check_branch
          %284 = sbr.rel (%p282) target = $region16
        $region15: #{tpu_custom_call.1} parent=11 // pred_region
          _
        $region16: #{tpu_custom_call.1} parent=11 // pred_fallthru
          _
        // Predicated region
        $region17: #{tpu_custom_call.1} parent=11 // pred_check
          %p285 = pneg %p115
        $region18: #{tpu_custom_call.1} parent=11 // pred_check_branch
          %287 = sbr.rel (%p285) target = $region20
        $region19: #{tpu_custom_call.1} parent=11 // pred_region
          _
        $region20: #{tpu_custom_call.1} parent=11 // pred_fallthru
          _
        // Predicated region
        $region21: #{tpu_custom_call.1} parent=11 // pred_check
          %p288 = pneg %p136
        $region22: #{tpu_custom_call.1} parent=11 // pred_check_branch
          %290 = sbr.rel (%p288) target = $region24
        $region23: #{tpu_custom_call.1} parent=11 // pred_region
          _
        $region24: #{tpu_custom_call.1} parent=11 // pred_fallthru
          _
        // Predicated region
        $region25: #{tpu_custom_call.1} parent=11 // pred_check
          %p291 = pneg %p157
        $region26: #{tpu_custom_call.1} parent=11 // pred_check_branch
          %293 = sbr.rel (%p291) target = $region28
        $region27: #{tpu_custom_call.1} parent=11 // pred_region
          _
        $region28: #{tpu_custom_call.1} parent=11 // pred_fallthru
          _
        // Predicated region
        $region29: #{tpu_custom_call.1} parent=11 // pred_check
          %p294 = pneg %p178
        $region30: #{tpu_custom_call.1} parent=11 // pred_check_branch
          %296 = sbr.rel (%p294) target = $region32
        $region31: #{tpu_custom_call.1} parent=11 // pred_region
          _
        $region32: #{tpu_custom_call.1} parent=11 // pred_fallthru
          _
        // Predicated region
        $region33: #{tpu_custom_call.1} parent=11 // pred_check
          %p297 = pneg %p199
        $region34: #{tpu_custom_call.1} parent=11 // pred_check_branch
          %299 = sbr.rel (%p297) target = $region36
        $region35: #{tpu_custom_call.1} parent=11 // pred_region
          _
        $region36: #{tpu_custom_call.1} parent=11 // pred_fallthru
          _
        // Predicated region
        $region37: #{tpu_custom_call.1} parent=11 // pred_check
          %p300 = pneg %p220
        $region38: #{tpu_custom_call.1} parent=11 // pred_check_branch
          %302 = sbr.rel (%p300) target = $region40
        $region39: #{tpu_custom_call.1} parent=11 // pred_region
          _
        $region40: #{tpu_custom_call.1} parent=11 // pred_fallthru
          _
        // Predicated region
        $region41: #{tpu_custom_call.1} parent=11 // pred_check
          %p303 = pneg %p241
        $region42: #{tpu_custom_call.1} parent=11 // pred_check_branch
          %305 = sbr.rel (%p303) target = $region44
        $region43: #{tpu_custom_call.1} parent=11 // pred_region
          _
        $region44: #{tpu_custom_call.1} parent=11 // pred_fallthru
          _
      $region12: #{tpu_custom_call.1} parent=5 // pred_fallthru
        _
      %p306 = scmp.lt.s32.totalorder %s21, 4
      // Predicated region
      $region45: #{tpu_custom_call.1} parent=5 // pred_check
        %p307 = pneg %p306
      $region46: #{tpu_custom_call.1} parent=5 // pred_check_branch
        %309 = sbr.rel (%p307) target = $region48
      $region47: #{tpu_custom_call.1} parent=5 // pred_region
        // Predicated region
        $region49: #{tpu_custom_call.1} parent=47 // pred_check
          %p310 = pneg %p41
        $region50: #{tpu_custom_call.1} parent=47 // pred_check_branch
          %312 = sbr.rel (%p310) target = $region52
        $region51: #{tpu_custom_call.1} parent=47 // pred_region
          %s313 = smul.u32 32, %s21
          %p314 = scmp.lt.s32.totalorder %s313, 127
          %s315 = scalar_select %p314, %s313, 127
          %s316 = smul.addr %s315, 8
          %s317 = scalar_lea.vmem %s0, %s316
          %s318 = smul.u32 32, %s21
        $region52: #{tpu_custom_call.1} parent=47 // pred_fallthru
          _
        // Predicated region
        $region53: #{tpu_custom_call.1} parent=47 // pred_check
          %p319 = pneg %p67
        $region54: #{tpu_custom_call.1} parent=47 // pred_check_branch
          %321 = sbr.rel (%p319) target = $region56
        $region55: #{tpu_custom_call.1} parent=47 // pred_region
          %s322 = smul.u32 32, %s21
          %p323 = scmp.lt.s32.totalorder %s322, 127
          %s324 = scalar_select %p323, %s322, 127
          %s325 = smul.addr %s324, 8
          %s326 = scalar_lea.vmem %s1, %s325
          %s327 = smul.u32 32, %s21
        $region56: #{tpu_custom_call.1} parent=47 // pred_fallthru
          _
      $region48: #{tpu_custom_call.1} parent=5 // pred_fallthru
        _
      %p328 = scmp.le.s32.totalorder 1, %s21
      %p329 = scmp.lt.s32.totalorder %s21, 5
      %p330 = pnand %p328, %p329
      %p331 = pneg %p330
      // Predicated region
      $region57: #{tpu_custom_call.1} parent=5 // pred_check
        _
      $region58: #{tpu_custom_call.1} parent=5 // pred_check_branch
        %333 = sbr.rel (%p330) target = $region60
      $region59: #{tpu_custom_call.1} parent=5 // pred_region
        %s334 = ssub.s32 %s21, 1
        %s335 = smul.u32 32, %s26
        %p336 = scmp.lt.s32.totalorder %s335, 127
        %s337 = scalar_select %p336, %s335, 127
        %s338 = smul.addr %s337, 8
        %s339 = scalar_lea.vmem %s0, %s338
        %p340 = pneg %p47
        %p341 = pneg %p44
        %s342 = smul.u32 32, %s26
        %p343 = scmp.lt.s32.totalorder %s342, 127
        %s344 = scalar_select %p343, %s342, 127
        %s345 = smul.addr %s344, 8
        %s346 = scalar_lea.vmem %s1, %s345
        %p347 = pneg %p73
        %p348 = pneg %p70
        %p349 = pneg %p94
        %p350 = pneg %p91
        %p351 = pneg %p115
        %p352 = pneg %p112
        %p353 = pneg %p136
        %p354 = pneg %p133
        %p355 = pneg %p157
        %p356 = pneg %p154
        %p357 = pneg %p178
        %p358 = pneg %p175
        %p359 = pneg %p199
        %p360 = pneg %p196
        %p361 = pneg %p220
        %p362 = pneg %p217
        %p363 = pneg %p241
        %p364 = pneg %p238
        %p365 = pneg %p267
        %p366 = pneg %p264
        %s367 = sand.u32 %s254, 1
        %s368 = scalar_lea.sflag [#allocation4], %s367
        %s369 = sand.u32 %s254, 1
        %s370 = smul.addr %s369, 256
        %s371 = scalar_lea.vmem [#allocation3], %s370
        %s372 = smul.u32 32, %s26
        %p373 = scmp.lt.s32.totalorder %s372, 127
        %s374 = scalar_select %p373, %s372, 127
        %s375 = smul.addr %s374, 8
        %s376 = scalar_lea.vmem %s0, %s375
        %s377 = smul.u32 32, %s26
        %s378 = smul.u32 32, %s26
        %p379 = scmp.lt.s32.totalorder %s378, 127
        %s380 = scalar_select %p379, %s378, 127
        %s381 = smul.addr %s380, 8
        %s382 = scalar_lea.vmem %s1, %s381
        %s383 = smul.u32 32, %s26
        %s384 = smul.u32 32, %s26
        %v385 = vld [vmem:[%s376] sm:$0xff]
        %v386 = vld [vmem:[%s376 + $0x8] sm:$0xff]
        %v387 = vld [vmem:[%s376 + $0x10] sm:$0xff]
        %v388 = vld [vmem:[%s376 + $0x18] sm:$0xff]
        %v389 = vld [vmem:[%s376 + $0x20] sm:$0xff]
        %v390 = vld [vmem:[%s376 + $0x28] sm:$0xff]
        %v391 = vld [vmem:[%s376 + $0x30] sm:$0xff]
        %v392 = vld [vmem:[%s376 + $0x38] sm:$0xff]
        %v393 = vld [vmem:[%s376 + $0x40] sm:$0xff]
        %v394 = vld [vmem:[%s376 + $0x48] sm:$0xff]
        %v395 = vld [vmem:[%s376 + $0x50] sm:$0xff]
        %v396 = vld [vmem:[%s376 + $0x58] sm:$0xff]
        %v397 = vld [vmem:[%s376 + $0x60] sm:$0xff]
        %v398 = vld [vmem:[%s376 + $0x68] sm:$0xff]
        %v399 = vld [vmem:[%s376 + $0x70] sm:$0xff]
        %v400 = vld [vmem:[%s376 + $0x78] sm:$0xff]
        %v401 = vld [vmem:[%s376 + $0x80] sm:$0xff]
        %v402 = vld [vmem:[%s376 + $0x88] sm:$0xff]
        %v403 = vld [vmem:[%s376 + $0x90] sm:$0xff]
        %v404 = vld [vmem:[%s376 + $0x98] sm:$0xff]
        %v405 = vld [vmem:[%s376 + $0xa0] sm:$0xff]
        %v406 = vld [vmem:[%s376 + $0xa8] sm:$0xff]
        %v407 = vld [vmem:[%s376 + $0xb0] sm:$0xff]
        %v408 = vld [vmem:[%s376 + $0xb8] sm:$0xff]
        %v409 = vld [vmem:[%s376 + $0xc0] sm:$0xff]
        %v410 = vld [vmem:[%s376 + $0xc8] sm:$0xff]
        %v411 = vld [vmem:[%s376 + $0xd0] sm:$0xff]
        %v412 = vld [vmem:[%s376 + $0xd8] sm:$0xff]
        %v413 = vld [vmem:[%s376 + $0xe0] sm:$0xff]
        %v414 = vld [vmem:[%s376 + $0xe8] sm:$0xff]
        %v415 = vld [vmem:[%s376 + $0xf0] sm:$0xff]
        %v416 = vld [vmem:[%s376 + $0xf8] sm:$0xff]
        %v417 = vld [vmem:[%s2] sm:$0xff]
        %v418 = vld [vmem:[%s2 + $0x8] sm:$0xff]
        %v419 = vld [vmem:[%s3] sm:$0x1]
        %v421 = vlaneseq
        %v422 = vshrl.u32 %v421, 7
        %v423 = vsub.s32 0, %v422
        %v424 = vrot.slane %v419, %v423
        %vm426 = vcmask 130048
        %v428 = vsel %vm426, %v385, 0
        %v431 = vsel %vm426, %v386, 0
        %v434 = vsel %vm426, %v387, 0
        %v437 = vsel %vm426, %v388, 0
        %v440 = vsel %vm426, %v389, 0
        %v443 = vsel %vm426, %v390, 0
        %v446 = vsel %vm426, %v391, 0
        %v449 = vsel %vm426, %v392, 0
        %v452 = vsel %vm426, %v393, 0
        %v455 = vsel %vm426, %v394, 0
        %v458 = vsel %vm426, %v395, 0
        %v461 = vsel %vm426, %v396, 0
        %v464 = vsel %vm426, %v397, 0
        %v467 = vsel %vm426, %v398, 0
        %v470 = vsel %vm426, %v399, 0
        %v473 = vsel %vm426, %v400, 0
        %v476 = vsel %vm426, %v401, 0
        %v479 = vsel %vm426, %v402, 0
        %v482 = vsel %vm426, %v403, 0
        %v485 = vsel %vm426, %v404, 0
        %v488 = vsel %vm426, %v405, 0
        %v491 = vsel %vm426, %v406, 0
        %v494 = vsel %vm426, %v407, 0
        %v497 = vsel %vm426, %v408, 0
        %v500 = vsel %vm426, %v409, 0
        %v503 = vsel %vm426, %v410, 0
        %v506 = vsel %vm426, %v411, 0
        %v509 = vsel %vm426, %v412, 0
        %v512 = vsel %vm426, %v413, 0
        %v515 = vsel %vm426, %v414, 0
        %v518 = vsel %vm426, %v415, 0
        %v521 = vsel %vm426, %v416, 0
        %523 = vmatprep.subr.mxu0 0.0
        %524 = vmatpush1.msra.mxu0 %v417
        %525 = vmatprep.subr.mxu0 0.0
        %526 = vmatpush1.msra.mxu0 %v418
        %527 = vmatprep.subr.mxu0 0.0
        %528 = vmatpush1.msra.mxu0 0.0
        %529 = vmatprep.subr.mxu0 0.0
        %530 = vmatpush1.msra.mxu0 0.0
        %531 = vmatprep.subr.mxu0 0.0
        %532 = vmatpush1.msra.mxu0 0.0
        %533 = vmatprep.subr.mxu0 0.0
        %534 = vmatpush1.msra.mxu0 0.0
        %535 = vmatprep.subr.mxu0 0.0
        %536 = vmatpush1.msra.mxu0 0.0
        %537 = vmatprep.subr.mxu0 0.0
        %538 = vmatpush1.msra.mxu0 0.0
        %539 = vmatprep.subr.mxu0 0.0
        %540 = vmatpush1.msra.mxu0 0.0
        %541 = vmatprep.subr.mxu0 0.0
        %542 = vmatpush1.msra.mxu0 0.0
        %543 = vmatprep.subr.mxu0 0.0
        %544 = vmatpush1.msra.mxu0 0.0
        %545 = vmatprep.subr.mxu0 0.0
        %546 = vmatpush1.msra.mxu0 0.0
        %547 = vmatprep.subr.mxu0 0.0
        %548 = vmatpush1.msra.mxu0 0.0
        %549 = vmatprep.subr.mxu0 0.0
        %550 = vmatpush1.msra.mxu0 0.0
        %551 = vmatprep.subr.mxu0 0.0
        %552 = vmatpush1.msra.mxu0 0.0
        %553 = vmatprep.subr.mxu0 0.0
        %554 = vmatpush1.msra.mxu0 0.0
        %555 = vmatprep.subr.mxu0 0.0
        %556 = vmatpush1.msra.mxu0 0.0
        %557 = vmatprep.subr.mxu0 0.0
        %558 = vmatpush1.msra.mxu0 0.0
        %559 = vmatprep.subr.mxu0 0.0
        %560 = vmatpush1.msra.mxu0 0.0
        %561 = vmatprep.subr.mxu0 0.0
        %562 = vmatpush1.msra.mxu0 0.0
        %563 = vmatprep.subr.mxu0 0.0
        %564 = vmatpush1.msra.mxu0 0.0
        %565 = vmatprep.subr.mxu0 0.0
        %566 = vmatpush1.msra.mxu0 0.0
        %567 = vmatprep.subr.mxu0 0.0
        %568 = vmatpush1.msra.mxu0 0.0
        %569 = vmatprep.subr.mxu0 0.0
        %570 = vmatpush1.msra.mxu0 0.0
        %571 = vmatprep.subr.mxu0 0.0
        %572 = vmatpush1.msra.mxu0 0.0
        %573 = vmatprep.subr.mxu0 0.0
        %574 = vmatpush1.msra.mxu0 0.0
        %575 = vmatprep.subr.mxu0 0.0
        %576 = vmatpush1.msra.mxu0 0.0
        %577 = vmatprep.subr.mxu0 0.0
        %578 = vmatpush1.msra.mxu0 0.0
        %579 = vmatprep.subr.mxu0 0.0
        %580 = vmatpush1.msra.mxu0 0.0
        %581 = vmatprep.subr.mxu0 0.0
        %582 = vmatpush1.msra.mxu0 0.0
        %583 = vmatprep.subr.mxu0 0.0
        %584 = vmatpush1.msra.mxu0 0.0
        %585 = vmatprep.subr.mxu0 0.0
        %586 = vmatpush1.msra.mxu0 0.0
        %587 = vmatprep.mubr.f32.mxu0 0.0
        %588 = vmatmul.mubr.f32.gmra.mrb[0].mxu0 %v428
        %v589 = vpop.f32.mrb[0].mxu0
        %v590 = vadd.f32 %v424, %v589
        %v591 = vpop.f32.mrb[0].mxu0
        %592 = vmatprep.mubr.f32.mxu0 0.0
        %593 = vmatmul.mubr.f32.gmra.mrb[0].mxu0 %v431
        %v594 = vpop.f32.mrb[0].mxu0
        %v595 = vadd.f32 %v424, %v594
        %v596 = vpop.f32.mrb[0].mxu0
        %597 = vmatprep.mubr.f32.mxu0 0.0
        %598 = vmatmul.mubr.f32.gmra.mrb[0].mxu0 %v434
        %v599 = vpop.f32.mrb[0].mxu0
        %v600 = vadd.f32 %v424, %v599
        %v601 = vpop.f32.mrb[0].mxu0
        %602 = vmatprep.mubr.f32.mxu0 0.0
        %603 = vmatmul.mubr.f32.gmra.mrb[0].mxu0 %v437
        %v604 = vpop.f32.mrb[0].mxu0
        %v605 = vadd.f32 %v424, %v604
        %v606 = vpop.f32.mrb[0].mxu0
        %607 = vmatprep.mubr.f32.mxu0 0.0
        %608 = vmatmul.mubr.f32.gmra.mrb[0].mxu0 %v440
        %v609 = vpop.f32.mrb[0].mxu0
        %v610 = vadd.f32 %v424, %v609
        %v611 = vpop.f32.mrb[0].mxu0
        %612 = vmatprep.mubr.f32.mxu0 0.0
        %613 = vmatmul.mubr.f32.gmra.mrb[0].mxu0 %v443
        %v614 = vpop.f32.mrb[0].mxu0
        %v615 = vadd.f32 %v424, %v614
        %v616 = vpop.f32.mrb[0].mxu0
        %617 = vmatprep.mubr.f32.mxu0 0.0
        %618 = vmatmul.mubr.f32.gmra.mrb[0].mxu0 %v446
        %v619 = vpop.f32.mrb[0].mxu0
        %v620 = vadd.f32 %v424, %v619
        %v621 = vpop.f32.mrb[0].mxu0
        %622 = vmatprep.mubr.f32.mxu0 0.0
        %623 = vmatmul.mubr.f32.gmra.mrb[0].mxu0 %v449
        %v624 = vpop.f32.mrb[0].mxu0
        %v625 = vadd.f32 %v424, %v624
        %v626 = vpop.f32.mrb[0].mxu0
        %627 = vmatprep.mubr.f32.mxu0 0.0
        %628 = vmatmul.mubr.f32.gmra.mrb[0].mxu0 %v452
        %v629 = vpop.f32.mrb[0].mxu0
        %v630 = vadd.f32 %v424, %v629
        %v631 = vpop.f32.mrb[0].mxu0
        %632 = vmatprep.mubr.f32.mxu0 0.0
        %633 = vmatmul.mubr.f32.gmra.mrb[0].mxu0 %v455
        %v634 = vpop.f32.mrb[0].mxu0
        %v635 = vadd.f32 %v424, %v634
        %v636 = vpop.f32.mrb[0].mxu0
        %637 = vmatprep.mubr.f32.mxu0 0.0
        %638 = vmatmul.mubr.f32.gmra.mrb[0].mxu0 %v458
        %v639 = vpop.f32.mrb[0].mxu0
        %v640 = vadd.f32 %v424, %v639
        %v641 = vpop.f32.mrb[0].mxu0
        %642 = vmatprep.mubr.f32.mxu0 0.0
        %643 = vmatmul.mubr.f32.gmra.mrb[0].mxu0 %v461
        %v644 = vpop.f32.mrb[0].mxu0
        %v645 = vadd.f32 %v424, %v644
        %v646 = vpop.f32.mrb[0].mxu0
        %647 = vmatprep.mubr.f32.mxu0 0.0
        %648 = vmatmul.mubr.f32.gmra.mrb[0].mxu0 %v464
        %v649 = vpop.f32.mrb[0].mxu0
        %v650 = vadd.f32 %v424, %v649
        %v651 = vpop.f32.mrb[0].mxu0
        %652 = vmatprep.mubr.f32.mxu0 0.0
        %653 = vmatmul.mubr.f32.gmra.mrb[0].mxu0 %v467
        %v654 = vpop.f32.mrb[0].mxu0
        %v655 = vadd.f32 %v424, %v654
        %v656 = vpop.f32.mrb[0].mxu0
        %657 = vmatprep.mubr.f32.mxu0 0.0
        %658 = vmatmul.mubr.f32.gmra.mrb[0].mxu0 %v470
        %v659 = vpop.f32.mrb[0].mxu0
        %v660 = vadd.f32 %v424, %v659
        %v661 = vpop.f32.mrb[0].mxu0
        %662 = vmatprep.mubr.f32.mxu0 0.0
        %663 = vmatmul.mubr.f32.gmra.mrb[0].mxu0 %v473
        %v664 = vpop.f32.mrb[0].mxu0
        %v665 = vadd.f32 %v424, %v664
        %v666 = vpop.f32.mrb[0].mxu0
        %667 = vmatprep.mubr.f32.mxu0 0.0
        %668 = vmatmul.mubr.f32.gmra.mrb[0].mxu0 %v476
        %v669 = vpop.f32.mrb[0].mxu0
        %v670 = vadd.f32 %v424, %v669
        %v671 = vpop.f32.mrb[0].mxu0
        %672 = vmatprep.mubr.f32.mxu0 0.0
        %673 = vmatmul.mubr.f32.gmra.mrb[0].mxu0 %v479
        %v674 = vpop.f32.mrb[0].mxu0
        %v675 = vadd.f32 %v424, %v674
        %v676 = vpop.f32.mrb[0].mxu0
        %677 = vmatprep.mubr.f32.mxu0 0.0
        %678 = vmatmul.mubr.f32.gmra.mrb[0].mxu0 %v482
        %v679 = vpop.f32.mrb[0].mxu0
        %v680 = vadd.f32 %v424, %v679
        %v681 = vpop.f32.mrb[0].mxu0
        %682 = vmatprep.mubr.f32.mxu0 0.0
        %683 = vmatmul.mubr.f32.gmra.mrb[0].mxu0 %v485
        %v684 = vpop.f32.mrb[0].mxu0
        %v685 = vadd.f32 %v424, %v684
        %v686 = vpop.f32.mrb[0].mxu0
        %687 = vmatprep.mubr.f32.mxu0 0.0
        %688 = vmatmul.mubr.f32.gmra.mrb[0].mxu0 %v488
        %v689 = vpop.f32.mrb[0].mxu0
        %v690 = vadd.f32 %v424, %v689
        %v691 = vpop.f32.mrb[0].mxu0
        %692 = vmatprep.mubr.f32.mxu0 0.0
        %693 = vmatmul.mubr.f32.gmra.mrb[0].mxu0 %v491
        %v694 = vpop.f32.mrb[0].mxu0
        %v695 = vadd.f32 %v424, %v694
        %v696 = vpop.f32.mrb[0].mxu0
        %697 = vmatprep.mubr.f32.mxu0 0.0
        %698 = vmatmul.mubr.f32.gmra.mrb[0].mxu0 %v494
        %v699 = vpop.f32.mrb[0].mxu0
        %v700 = vadd.f32 %v424, %v699
        %v701 = vpop.f32.mrb[0].mxu0
        %702 = vmatprep.mubr.f32.mxu0 0.0
        %703 = vmatmul.mubr.f32.gmra.mrb[0].mxu0 %v497
        %v704 = vpop.f32.mrb[0].mxu0
        %v705 = vadd.f32 %v424, %v704
        %v706 = vpop.f32.mrb[0].mxu0
        %707 = vmatprep.mubr.f32.mxu0 0.0
        %708 = vmatmul.mubr.f32.gmra.mrb[0].mxu0 %v500
        %v709 = vpop.f32.mrb[0].mxu0
        %v710 = vadd.f32 %v424, %v709
        %v711 = vpop.f32.mrb[0].mxu0
        %712 = vmatprep.mubr.f32.mxu0 0.0
        %713 = vmatmul.mubr.f32.gmra.mrb[0].mxu0 %v503
        %v714 = vpop.f32.mrb[0].mxu0
        %v715 = vadd.f32 %v424, %v714
        %v716 = vpop.f32.mrb[0].mxu0
        %717 = vmatprep.mubr.f32.mxu0 0.0
        %718 = vmatmul.mubr.f32.gmra.mrb[0].mxu0 %v506
        %v719 = vpop.f32.mrb[0].mxu0
        %v720 = vadd.f32 %v424, %v719
        %v721 = vpop.f32.mrb[0].mxu0
        %722 = vmatprep.mubr.f32.mxu0 0.0
        %723 = vmatmul.mubr.f32.gmra.mrb[0].mxu0 %v509
        %v724 = vpop.f32.mrb[0].mxu0
        %v725 = vadd.f32 %v424, %v724
        %v726 = vpop.f32.mrb[0].mxu0
        %727 = vmatprep.mubr.f32.mxu0 0.0
        %728 = vmatmul.mubr.f32.gmra.mrb[0].mxu0 %v512
        %v729 = vpop.f32.mrb[0].mxu0
        %v730 = vadd.f32 %v424, %v729
        %v731 = vpop.f32.mrb[0].mxu0
        %732 = vmatprep.mubr.f32.mxu0 0.0
        %733 = vmatmul.mubr.f32.gmra.mrb[0].mxu0 %v515
        %v734 = vpop.f32.mrb[0].mxu0
        %v735 = vadd.f32 %v424, %v734
        %v736 = vpop.f32.mrb[0].mxu0
        %737 = vmatprep.mubr.f32.mxu0 0.0
        %738 = vmatmul.mubr.f32.gmra.mrb[0].mxu0 %v518
        %v739 = vpop.f32.mrb[0].mxu0
        %v740 = vadd.f32 %v424, %v739
        %v741 = vpop.f32.mrb[0].mxu0
        %742 = vmatprep.mubr.f32.mxu0 0.0
        %743 = vmatmul.mubr.f32.gmra.mrb[0].mxu0 %v521
        %v744 = vpop.f32.mrb[0].mxu0
        %v745 = vadd.f32 %v424, %v744
        %v746 = vpop.f32.mrb[0].mxu0
        %747 = vdwg.mxu0
        %v748 = vtanh.pop %v590
        %v749 = vtanh.pop %v595
        %v750 = vtanh.pop %v600
        %v751 = vtanh.pop %v605
        %v752 = vtanh.pop %v610
        %v753 = vtanh.pop %v615
        %v754 = vtanh.pop %v620
        %v755 = vtanh.pop %v625
        %v756 = vtanh.pop %v630
        %v757 = vtanh.pop %v635
        %v758 = vtanh.pop %v640
        %v759 = vtanh.pop %v645
        %v760 = vtanh.pop %v650
        %v761 = vtanh.pop %v655
        %v762 = vtanh.pop %v660
        %v763 = vtanh.pop %v665
        %v764 = vtanh.pop %v670
        %v765 = vtanh.pop %v675
        %v766 = vtanh.pop %v680
        %v767 = vtanh.pop %v685
        %v768 = vtanh.pop %v690
        %v769 = vtanh.pop %v695
        %v770 = vtanh.pop %v700
        %v771 = vtanh.pop %v705
        %v772 = vtanh.pop %v710
        %v773 = vtanh.pop %v715
        %v774 = vtanh.pop %v720
        %v775 = vtanh.pop %v725
        %v776 = vtanh.pop %v730
        %v777 = vtanh.pop %v735
        %v778 = vtanh.pop %v740
        %v779 = vtanh.pop %v745
        %v780 = vld [vmem:[%s4] sm:$0xff]
        %v781 = vld [vmem:[%s4 + $0x8] sm:$0xff]
        %v782 = vld [vmem:[%s4 + $0x10] sm:$0xff]
        %v783 = vld [vmem:[%s4 + $0x18] sm:$0xff]
        %v784 = vld [vmem:[%s5] sm:$0x1]
        %v786 = vlaneseq
        %v787 = vshrl.u32 %v786, 7
        %v788 = vsub.s32 0, %v787
        %v789 = vrot.slane %v784, %v788
        %vm791 = vcmask 261120
        %v793 = vsel %vm791, %v748, 0
        %v796 = vsel %vm791, %v749, 0
        %v799 = vsel %vm791, %v750, 0
        %v802 = vsel %vm791, %v751, 0
        %v805 = vsel %vm791, %v752, 0
        %v808 = vsel %vm791, %v753, 0
        %v811 = vsel %vm791, %v754, 0
        %v814 = vsel %vm791, %v755, 0
        %v817 = vsel %vm791, %v756, 0
        %v820 = vsel %vm791, %v757, 0
        %v823 = vsel %vm791, %v758, 0
        %v826 = vsel %vm791, %v759, 0
        %v829 = vsel %vm791, %v760, 0
        %v832 = vsel %vm791, %v761, 0
        %v835 = vsel %vm791, %v762, 0
        %v838 = vsel %vm791, %v763, 0
        %v841 = vsel %vm791, %v764, 0
        %v844 = vsel %vm791, %v765, 0
        %v847 = vsel %vm791, %v766, 0
        %v850 = vsel %vm791, %v767, 0
        %v853 = vsel %vm791, %v768, 0
        %v856 = vsel %vm791, %v769, 0
        %v859 = vsel %vm791, %v770, 0
        %v862 = vsel %vm791, %v771, 0
        %v865 = vsel %vm791, %v772, 0
        %v868 = vsel %vm791, %v773, 0
        %v871 = vsel %vm791, %v774, 0
        %v874 = vsel %vm791, %v775, 0
        %v877 = vsel %vm791, %v776, 0
        %v880 = vsel %vm791, %v777, 0
        %v883 = vsel %vm791, %v778, 0
        %v886 = vsel %vm791, %v779, 0
        %888 = vmatprep.subr.mxu0 0.0
        %889 = vmatpush1.msra.mxu0 %v780
        %890 = vmatprep.subr.mxu0 0.0
        %891 = vmatpush1.msra.mxu0 %v781
        %892 = vmatprep.subr.mxu0 0.0
        %893 = vmatpush1.msra.mxu0 %v782
        %894 = vmatprep.subr.mxu0 0.0
        %895 = vmatpush1.msra.mxu0 %v783
        %896 = vmatprep.subr.mxu0 0.0
        %897 = vmatpush1.msra.mxu0 0.0
        %898 = vmatprep.subr.mxu0 0.0
        %899 = vmatpush1.msra.mxu0 0.0
        %900 = vmatprep.subr.mxu0 0.0
        %901 = vmatpush1.msra.mxu0 0.0
        %902 = vmatprep.subr.mxu0 0.0
        %903 = vmatpush1.msra.mxu0 0.0
        %904 = vmatprep.subr.mxu0 0.0
        %905 = vmatpush1.msra.mxu0 0.0
        %906 = vmatprep.subr.mxu0 0.0
        %907 = vmatpush1.msra.mxu0 0.0
        %908 = vmatprep.subr.mxu0 0.0
        %909 = vmatpush1.msra.mxu0 0.0
        %910 = vmatprep.subr.mxu0 0.0
        %911 = vmatpush1.msra.mxu0 0.0
        %912 = vmatprep.subr.mxu0 0.0
        %913 = vmatpush1.msra.mxu0 0.0
        %914 = vmatprep.subr.mxu0 0.0
        %915 = vmatpush1.msra.mxu0 0.0
        %916 = vmatprep.subr.mxu0 0.0
        %917 = vmatpush1.msra.mxu0 0.0
        %918 = vmatprep.subr.mxu0 0.0
        %919 = vmatpush1.msra.mxu0 0.0
        %920 = vmatprep.subr.mxu0 0.0
        %921 = vmatpush1.msra.mxu0 0.0
        %922 = vmatprep.subr.mxu0 0.0
        %923 = vmatpush1.msra.mxu0 0.0
        %924 = vmatprep.subr.mxu0 0.0
        %925 = vmatpush1.msra.mxu0 0.0
        %926 = vmatprep.subr.mxu0 0.0
        %927 = vmatpush1.msra.mxu0 0.0
        %928 = vmatprep.subr.mxu0 0.0
        %929 = vmatpush1.msra.mxu0 0.0
        %930 = vmatprep.subr.mxu0 0.0
        %931 = vmatpush1.msra.mxu0 0.0
        %932 = vmatprep.subr.mxu0 0.0
        %933 = vmatpush1.msra.mxu0 0.0
        %934 = vmatprep.subr.mxu0 0.0
        %935 = vmatpush1.msra.mxu0 0.0
        %936 = vmatprep.subr.mxu0 0.0
        %937 = vmatpush1.msra.mxu0 0.0
        %938 = vmatprep.subr.mxu0 0.0
        %939 = vmatpush1.msra.mxu0 0.0
        %940 = vmatprep.subr.mxu0 0.0
        %941 = vmatpush1.msra.mxu0 0.0
        %942 = vmatprep.subr.mxu0 0.0
        %943 = vmatpush1.msra.mxu0 0.0
        %944 = vmatprep.subr.mxu0 0.0
        %945 = vmatpush1.msra.mxu0 0.0
        %946 = vmatprep.subr.mxu0 0.0
        %947 = vmatpush1.msra.mxu0 0.0
        %948 = vmatprep.subr.mxu0 0.0
        %949 = vmatpush1.msra.mxu0 0.0
        %950 = vmatprep.subr.mxu0 0.0
        %951 = vmatpush1.msra.mxu0 0.0
        %952 = vmatprep.mubr.f32.mxu0 0.0
        %953 = vmatmul.mubr.f32.gmra.mrb[0].mxu0 %v793
        %v954 = vpop.f32.mrb[0].mxu0
        %v955 = vadd.f32 %v789, %v954
        %v956 = vpop.f32.mrb[0].mxu0
        %957 = vmatprep.mubr.f32.mxu0 0.0
        %958 = vmatmul.mubr.f32.gmra.mrb[0].mxu0 %v796
        %v959 = vpop.f32.mrb[0].mxu0
        %v960 = vadd.f32 %v789, %v959
        %v961 = vpop.f32.mrb[0].mxu0
        %962 = vmatprep.mubr.f32.mxu0 0.0
        %963 = vmatmul.mubr.f32.gmra.mrb[0].mxu0 %v799
        %v964 = vpop.f32.mrb[0].mxu0
        %v965 = vadd.f32 %v789, %v964
        %v966 = vpop.f32.mrb[0].mxu0
        %967 = vmatprep.mubr.f32.mxu0 0.0
        %968 = vmatmul.mubr.f32.gmra.mrb[0].mxu0 %v802
        %v969 = vpop.f32.mrb[0].mxu0
        %v970 = vadd.f32 %v789, %v969
        %v971 = vpop.f32.mrb[0].mxu0
        %972 = vmatprep.mubr.f32.mxu0 0.0
        %973 = vmatmul.mubr.f32.gmra.mrb[0].mxu0 %v805
        %v974 = vpop.f32.mrb[0].mxu0
        %v975 = vadd.f32 %v789, %v974
        %v976 = vpop.f32.mrb[0].mxu0
        %977 = vmatprep.mubr.f32.mxu0 0.0
        %978 = vmatmul.mubr.f32.gmra.mrb[0].mxu0 %v808
        %v979 = vpop.f32.mrb[0].mxu0
        %v980 = vadd.f32 %v789, %v979
        %v981 = vpop.f32.mrb[0].mxu0
        %982 = vmatprep.mubr.f32.mxu0 0.0
        %983 = vmatmul.mubr.f32.gmra.mrb[0].mxu0 %v811
        %v984 = vpop.f32.mrb[0].mxu0
        %v985 = vadd.f32 %v789, %v984
        %v986 = vpop.f32.mrb[0].mxu0
        %987 = vmatprep.mubr.f32.mxu0 0.0
        %988 = vmatmul.mubr.f32.gmra.mrb[0].mxu0 %v814
        %v989 = vpop.f32.mrb[0].mxu0
        %v990 = vadd.f32 %v789, %v989
        %v991 = vpop.f32.mrb[0].mxu0
        %992 = vmatprep.mubr.f32.mxu0 0.0
        %993 = vmatmul.mubr.f32.gmra.mrb[0].mxu0 %v817
        %v994 = vpop.f32.mrb[0].mxu0
        %v995 = vadd.f32 %v789, %v994
        %v996 = vpop.f32.mrb[0].mxu0
        %997 = vmatprep.mubr.f32.mxu0 0.0
        %998 = vmatmul.mubr.f32.gmra.mrb[0].mxu0 %v820
        %v999 = vpop.f32.mrb[0].mxu0
        %v1000 = vadd.f32 %v789, %v999
        %v1001 = vpop.f32.mrb[0].mxu0
        %1002 = vmatprep.mubr.f32.mxu0 0.0
        %1003 = vmatmul.mubr.f32.gmra.mrb[0].mxu0 %v823
        %v1004 = vpop.f32.mrb[0].mxu0
        %v1005 = vadd.f32 %v789, %v1004
        %v1006 = vpop.f32.mrb[0].mxu0
        %1007 = vmatprep.mubr.f32.mxu0 0.0
        %1008 = vmatmul.mubr.f32.gmra.mrb[0].mxu0 %v826
        %v1009 = vpop.f32.mrb[0].mxu0
        %v1010 = vadd.f32 %v789, %v1009
        %v1011 = vpop.f32.mrb[0].mxu0
        %1012 = vmatprep.mubr.f32.mxu0 0.0
        %1013 = vmatmul.mubr.f32.gmra.mrb[0].mxu0 %v829
        %v1014 = vpop.f32.mrb[0].mxu0
        %v1015 = vadd.f32 %v789, %v1014
        %v1016 = vpop.f32.mrb[0].mxu0
        %1017 = vmatprep.mubr.f32.mxu0 0.0
        %1018 = vmatmul.mubr.f32.gmra.mrb[0].mxu0 %v832
        %v1019 = vpop.f32.mrb[0].mxu0
        %v1020 = vadd.f32 %v789, %v1019
        %v1021 = vpop.f32.mrb[0].mxu0
        %1022 = vmatprep.mubr.f32.mxu0 0.0
        %1023 = vmatmul.mubr.f32.gmra.mrb[0].mxu0 %v835
        %v1024 = vpop.f32.mrb[0].mxu0
        %v1025 = vadd.f32 %v789, %v1024
        %v1026 = vpop.f32.mrb[0].mxu0
        %1027 = vmatprep.mubr.f32.mxu0 0.0
        %1028 = vmatmul.mubr.f32.gmra.mrb[0].mxu0 %v838
        %v1029 = vpop.f32.mrb[0].mxu0
        %v1030 = vadd.f32 %v789, %v1029
        %v1031 = vpop.f32.mrb[0].mxu0
        %1032 = vmatprep.mubr.f32.mxu0 0.0
        %1033 = vmatmul.mubr.f32.gmra.mrb[0].mxu0 %v841
        %v1034 = vpop.f32.mrb[0].mxu0
        %v1035 = vadd.f32 %v789, %v1034
        %v1036 = vpop.f32.mrb[0].mxu0
        %1037 = vmatprep.mubr.f32.mxu0 0.0
        %1038 = vmatmul.mubr.f32.gmra.mrb[0].mxu0 %v844
        %v1039 = vpop.f32.mrb[0].mxu0
        %v1040 = vadd.f32 %v789, %v1039
        %v1041 = vpop.f32.mrb[0].mxu0
        %1042 = vmatprep.mubr.f32.mxu0 0.0
        %1043 = vmatmul.mubr.f32.gmra.mrb[0].mxu0 %v847
        %v1044 = vpop.f32.mrb[0].mxu0
        %v1045 = vadd.f32 %v789, %v1044
        %v1046 = vpop.f32.mrb[0].mxu0
        %1047 = vmatprep.mubr.f32.mxu0 0.0
        %1048 = vmatmul.mubr.f32.gmra.mrb[0].mxu0 %v850
        %v1049 = vpop.f32.mrb[0].mxu0
        %v1050 = vadd.f32 %v789, %v1049
        %v1051 = vpop.f32.mrb[0].mxu0
        %1052 = vmatprep.mubr.f32.mxu0 0.0
        %1053 = vmatmul.mubr.f32.gmra.mrb[0].mxu0 %v853
        %v1054 = vpop.f32.mrb[0].mxu0
        %v1055 = vadd.f32 %v789, %v1054
        %v1056 = vpop.f32.mrb[0].mxu0
        %1057 = vmatprep.mubr.f32.mxu0 0.0
        %1058 = vmatmul.mubr.f32.gmra.mrb[0].mxu0 %v856
        %v1059 = vpop.f32.mrb[0].mxu0
        %v1060 = vadd.f32 %v789, %v1059
        %v1061 = vpop.f32.mrb[0].mxu0
        %1062 = vmatprep.mubr.f32.mxu0 0.0
        %1063 = vmatmul.mubr.f32.gmra.mrb[0].mxu0 %v859
        %v1064 = vpop.f32.mrb[0].mxu0
        %v1065 = vadd.f32 %v789, %v1064
        %v1066 = vpop.f32.mrb[0].mxu0
        %1067 = vmatprep.mubr.f32.mxu0 0.0
        %1068 = vmatmul.mubr.f32.gmra.mrb[0].mxu0 %v862
        %v1069 = vpop.f32.mrb[0].mxu0
        %v1070 = vadd.f32 %v789, %v1069
        %v1071 = vpop.f32.mrb[0].mxu0
        %1072 = vmatprep.mubr.f32.mxu0 0.0
        %1073 = vmatmul.mubr.f32.gmra.mrb[0].mxu0 %v865
        %v1074 = vpop.f32.mrb[0].mxu0
        %v1075 = vadd.f32 %v789, %v1074
        %v1076 = vpop.f32.mrb[0].mxu0
        %1077 = vmatprep.mubr.f32.mxu0 0.0
        %1078 = vmatmul.mubr.f32.gmra.mrb[0].mxu0 %v868
        %v1079 = vpop.f32.mrb[0].mxu0
        %v1080 = vadd.f32 %v789, %v1079
        %v1081 = vpop.f32.mrb[0].mxu0
        %1082 = vmatprep.mubr.f32.mxu0 0.0
        %1083 = vmatmul.mubr.f32.gmra.mrb[0].mxu0 %v871
        %v1084 = vpop.f32.mrb[0].mxu0
        %v1085 = vadd.f32 %v789, %v1084
        %v1086 = vpop.f32.mrb[0].mxu0
        %1087 = vmatprep.mubr.f32.mxu0 0.0
        %1088 = vmatmul.mubr.f32.gmra.mrb[0].mxu0 %v874
        %v1089 = vpop.f32.mrb[0].mxu0
        %v1090 = vadd.f32 %v789, %v1089
        %v1091 = vpop.f32.mrb[0].mxu0
        %1092 = vmatprep.mubr.f32.mxu0 0.0
        %1093 = vmatmul.mubr.f32.gmra.mrb[0].mxu0 %v877
        %v1094 = vpop.f32.mrb[0].mxu0
        %v1095 = vadd.f32 %v789, %v1094
        %v1096 = vpop.f32.mrb[0].mxu0
        %1097 = vmatprep.mubr.f32.mxu0 0.0
        %1098 = vmatmul.mubr.f32.gmra.mrb[0].mxu0 %v880
        %v1099 = vpop.f32.mrb[0].mxu0
        %v1100 = vadd.f32 %v789, %v1099
        %v1101 = vpop.f32.mrb[0].mxu0
        %1102 = vmatprep.mubr.f32.mxu0 0.0
        %1103 = vmatmul.mubr.f32.gmra.mrb[0].mxu0 %v883
        %v1104 = vpop.f32.mrb[0].mxu0
        %v1105 = vadd.f32 %v789, %v1104
        %v1106 = vpop.f32.mrb[0].mxu0
        %1107 = vmatprep.mubr.f32.mxu0 0.0
        %1108 = vmatmul.mubr.f32.gmra.mrb[0].mxu0 %v886
        %v1109 = vpop.f32.mrb[0].mxu0
        %v1110 = vadd.f32 %v789, %v1109
        %v1111 = vpop.f32.mrb[0].mxu0
        %1112 = vdwg.mxu0
        %v1113 = vtanh.pop %v955
        %v1114 = vtanh.pop %v960
        %v1115 = vtanh.pop %v965
        %v1116 = vtanh.pop %v970
        %v1117 = vtanh.pop %v975
        %v1118 = vtanh.pop %v980
        %v1119 = vtanh.pop %v985
        %v1120 = vtanh.pop %v990
        %v1121 = vtanh.pop %v995
        %v1122 = vtanh.pop %v1000
        %v1123 = vtanh.pop %v1005
        %v1124 = vtanh.pop %v1010
        %v1125 = vtanh.pop %v1015
        %v1126 = vtanh.pop %v1020
        %v1127 = vtanh.pop %v1025
        %v1128 = vtanh.pop %v1030
        %v1129 = vtanh.pop %v1035
        %v1130 = vtanh.pop %v1040
        %v1131 = vtanh.pop %v1045
        %v1132 = vtanh.pop %v1050
        %v1133 = vtanh.pop %v1055
        %v1134 = vtanh.pop %v1060
        %v1135 = vtanh.pop %v1065
        %v1136 = vtanh.pop %v1070
        %v1137 = vtanh.pop %v1075
        %v1138 = vtanh.pop %v1080
        %v1139 = vtanh.pop %v1085
        %v1140 = vtanh.pop %v1090
        %v1141 = vtanh.pop %v1095
        %v1142 = vtanh.pop %v1100
        %v1143 = vtanh.pop %v1105
        %v1144 = vtanh.pop %v1110
        %v1145 = vld [vmem:[%s6] sm:$0xff]
        %v1146 = vld [vmem:[%s6 + $0x8] sm:$0xff]
        %v1147 = vld [vmem:[%s6 + $0x10] sm:$0xff]
        %v1148 = vld [vmem:[%s6 + $0x18] sm:$0xff]
        %v1149 = vld [vmem:[%s7] sm:$0x1]
        %v1151 = vlaneseq
        %v1152 = vshrl.u32 %v1151, 7
        %v1153 = vsub.s32 0, %v1152
        %v1154 = vrot.slane %v1149, %v1153
        %v1157 = vsel %vm791, %v1113, 0
        %v1160 = vsel %vm791, %v1114, 0
        %v1163 = vsel %vm791, %v1115, 0
        %v1166 = vsel %vm791, %v1116, 0
        %v1169 = vsel %vm791, %v1117, 0
        %v1172 = vsel %vm791, %v1118, 0
        %v1175 = vsel %vm791, %v1119, 0
        %v1178 = vsel %vm791, %v1120, 0
        %v1181 = vsel %vm791, %v1121, 0
        %v1184 = vsel %vm791, %v1122, 0
        %v1187 = vsel %vm791, %v1123, 0
        %v1190 = vsel %vm791, %v1124, 0
        %v1193 = vsel %vm791, %v1125, 0
        %v1196 = vsel %vm791, %v1126, 0
        %v1199 = vsel %vm791, %v1127, 0
        %v1202 = vsel %vm791, %v1128, 0
        %v1205 = vsel %vm791, %v1129, 0
        %v1208 = vsel %vm791, %v1130, 0
        %v1211 = vsel %vm791, %v1131, 0
        %v1214 = vsel %vm791, %v1132, 0
        %v1217 = vsel %vm791, %v1133, 0
        %v1220 = vsel %vm791, %v1134, 0
        %v1223 = vsel %vm791, %v1135, 0
        %v1226 = vsel %vm791, %v1136, 0
        %v1229 = vsel %vm791, %v1137, 0
        %v1232 = vsel %vm791, %v1138, 0
        %v1235 = vsel %vm791, %v1139, 0
        %v1238 = vsel %vm791, %v1140, 0
        %v1241 = vsel %vm791, %v1141, 0
        %v1244 = vsel %vm791, %v1142, 0
        %v1247 = vsel %vm791, %v1143, 0
        %v1250 = vsel %vm791, %v1144, 0
        %1252 = vmatprep.subr.mxu0 0.0
        %1253 = vmatpush1.msra.mxu0 %v1145
        %1254 = vmatprep.subr.mxu0 0.0
        %1255 = vmatpush1.msra.mxu0 %v1146
        %1256 = vmatprep.subr.mxu0 0.0
        %1257 = vmatpush1.msra.mxu0 %v1147
        %1258 = vmatprep.subr.mxu0 0.0
        %1259 = vmatpush1.msra.mxu0 %v1148
        %1260 = vmatprep.subr.mxu0 0.0
        %1261 = vmatpush1.msra.mxu0 0.0
        %1262 = vmatprep.subr.mxu0 0.0
        %1263 = vmatpush1.msra.mxu0 0.0
        %1264 = vmatprep.subr.mxu0 0.0
        %1265 = vmatpush1.msra.mxu0 0.0
        %1266 = vmatprep.subr.mxu0 0.0
        %1267 = vmatpush1.msra.mxu0 0.0
        %1268 = vmatprep.subr.mxu0 0.0
        %1269 = vmatpush1.msra.mxu0 0.0
        %1270 = vmatprep.subr.mxu0 0.0
        %1271 = vmatpush1.msra.mxu0 0.0
        %1272 = vmatprep.subr.mxu0 0.0
        %1273 = vmatpush1.msra.mxu0 0.0
        %1274 = vmatprep.subr.mxu0 0.0
        %1275 = vmatpush1.msra.mxu0 0.0
        %1276 = vmatprep.subr.mxu0 0.0
        %1277 = vmatpush1.msra.mxu0 0.0
        %1278 = vmatprep.subr.mxu0 0.0
        %1279 = vmatpush1.msra.mxu0 0.0
        %1280 = vmatprep.subr.mxu0 0.0
        %1281 = vmatpush1.msra.mxu0 0.0
        %1282 = vmatprep.subr.mxu0 0.0
        %1283 = vmatpush1.msra.mxu0 0.0
        %1284 = vmatprep.subr.mxu0 0.0
        %1285 = vmatpush1.msra.mxu0 0.0
        %1286 = vmatprep.subr.mxu0 0.0
        %1287 = vmatpush1.msra.mxu0 0.0
        %1288 = vmatprep.subr.mxu0 0.0
        %1289 = vmatpush1.msra.mxu0 0.0
        %1290 = vmatprep.subr.mxu0 0.0
        %1291 = vmatpush1.msra.mxu0 0.0
        %1292 = vmatprep.subr.mxu0 0.0
        %1293 = vmatpush1.msra.mxu0 0.0
        %1294 = vmatprep.subr.mxu0 0.0
        %1295 = vmatpush1.msra.mxu0 0.0
        %1296 = vmatprep.subr.mxu0 0.0
        %1297 = vmatpush1.msra.mxu0 0.0
        %1298 = vmatprep.subr.mxu0 0.0
        %1299 = vmatpush1.msra.mxu0 0.0
        %1300 = vmatprep.subr.mxu0 0.0
        %1301 = vmatpush1.msra.mxu0 0.0
        %1302 = vmatprep.subr.mxu0 0.0
        %1303 = vmatpush1.msra.mxu0 0.0
        %1304 = vmatprep.subr.mxu0 0.0
        %1305 = vmatpush1.msra.mxu0 0.0
        %1306 = vmatprep.subr.mxu0 0.0
        %1307 = vmatpush1.msra.mxu0 0.0
        %1308 = vmatprep.subr.mxu0 0.0
        %1309 = vmatpush1.msra.mxu0 0.0
        %1310 = vmatprep.subr.mxu0 0.0
        %1311 = vmatpush1.msra.mxu0 0.0
        %1312 = vmatprep.subr.mxu0 0.0
        %1313 = vmatpush1.msra.mxu0 0.0
        %1314 = vmatprep.subr.mxu0 0.0
        %1315 = vmatpush1.msra.mxu0 0.0
        %1316 = vmatprep.mubr.f32.mxu0 0.0
        %1317 = vmatmul.mubr.f32.gmra.mrb[0].mxu0 %v1157
        %v1318 = vpop.f32.mrb[0].mxu0
        %v1319 = vadd.f32 %v1154, %v1318
        %v1320 = vpop.f32.mrb[0].mxu0
        %1321 = vmatprep.mubr.f32.mxu0 0.0
        %1322 = vmatmul.mubr.f32.gmra.mrb[0].mxu0 %v1160
        %v1323 = vpop.f32.mrb[0].mxu0
        %v1324 = vadd.f32 %v1154, %v1323
        %v1325 = vpop.f32.mrb[0].mxu0
        %1326 = vmatprep.mubr.f32.mxu0 0.0
        %1327 = vmatmul.mubr.f32.gmra.mrb[0].mxu0 %v1163
        %v1328 = vpop.f32.mrb[0].mxu0
        %v1329 = vadd.f32 %v1154, %v1328
        %v1330 = vpop.f32.mrb[0].mxu0
        %1331 = vmatprep.mubr.f32.mxu0 0.0
        %1332 = vmatmul.mubr.f32.gmra.mrb[0].mxu0 %v1166
        %v1333 = vpop.f32.mrb[0].mxu0
        %v1334 = vadd.f32 %v1154, %v1333
        %v1335 = vpop.f32.mrb[0].mxu0
        %1336 = vmatprep.mubr.f32.mxu0 0.0
        %1337 = vmatmul.mubr.f32.gmra.mrb[0].mxu0 %v1169
        %v1338 = vpop.f32.mrb[0].mxu0
        %v1339 = vadd.f32 %v1154, %v1338
        %v1340 = vpop.f32.mrb[0].mxu0
        %1341 = vmatprep.mubr.f32.mxu0 0.0
        %1342 = vmatmul.mubr.f32.gmra.mrb[0].mxu0 %v1172
        %v1343 = vpop.f32.mrb[0].mxu0
        %v1344 = vadd.f32 %v1154, %v1343
        %v1345 = vpop.f32.mrb[0].mxu0
        %1346 = vmatprep.mubr.f32.mxu0 0.0
        %1347 = vmatmul.mubr.f32.gmra.mrb[0].mxu0 %v1175
        %v1348 = vpop.f32.mrb[0].mxu0
        %v1349 = vadd.f32 %v1154, %v1348
        %v1350 = vpop.f32.mrb[0].mxu0
        %1351 = vmatprep.mubr.f32.mxu0 0.0
        %1352 = vmatmul.mubr.f32.gmra.mrb[0].mxu0 %v1178
        %v1353 = vpop.f32.mrb[0].mxu0
        %v1354 = vadd.f32 %v1154, %v1353
        %v1355 = vpop.f32.mrb[0].mxu0
        %1356 = vmatprep.mubr.f32.mxu0 0.0
        %1357 = vmatmul.mubr.f32.gmra.mrb[0].mxu0 %v1181
        %v1358 = vpop.f32.mrb[0].mxu0
        %v1359 = vadd.f32 %v1154, %v1358
        %v1360 = vpop.f32.mrb[0].mxu0
        %1361 = vmatprep.mubr.f32.mxu0 0.0
        %1362 = vmatmul.mubr.f32.gmra.mrb[0].mxu0 %v1184
        %v1363 = vpop.f32.mrb[0].mxu0
        %v1364 = vadd.f32 %v1154, %v1363
        %v1365 = vpop.f32.mrb[0].mxu0
        %1366 = vmatprep.mubr.f32.mxu0 0.0
        %1367 = vmatmul.mubr.f32.gmra.mrb[0].mxu0 %v1187
        %v1368 = vpop.f32.mrb[0].mxu0
        %v1369 = vadd.f32 %v1154, %v1368
        %v1370 = vpop.f32.mrb[0].mxu0
        %1371 = vmatprep.mubr.f32.mxu0 0.0
        %1372 = vmatmul.mubr.f32.gmra.mrb[0].mxu0 %v1190
        %v1373 = vpop.f32.mrb[0].mxu0
        %v1374 = vadd.f32 %v1154, %v1373
        %v1375 = vpop.f32.mrb[0].mxu0
        %1376 = vmatprep.mubr.f32.mxu0 0.0
        %1377 = vmatmul.mubr.f32.gmra.mrb[0].mxu0 %v1193
        %v1378 = vpop.f32.mrb[0].mxu0
        %v1379 = vadd.f32 %v1154, %v1378
        %v1380 = vpop.f32.mrb[0].mxu0
        %1381 = vmatprep.mubr.f32.mxu0 0.0
        %1382 = vmatmul.mubr.f32.gmra.mrb[0].mxu0 %v1196
        %v1383 = vpop.f32.mrb[0].mxu0
        %v1384 = vadd.f32 %v1154, %v1383
        %v1385 = vpop.f32.mrb[0].mxu0
        %1386 = vmatprep.mubr.f32.mxu0 0.0
        %1387 = vmatmul.mubr.f32.gmra.mrb[0].mxu0 %v1199
        %v1388 = vpop.f32.mrb[0].mxu0
        %v1389 = vadd.f32 %v1154, %v1388
        %v1390 = vpop.f32.mrb[0].mxu0
        %1391 = vmatprep.mubr.f32.mxu0 0.0
        %1392 = vmatmul.mubr.f32.gmra.mrb[0].mxu0 %v1202
        %v1393 = vpop.f32.mrb[0].mxu0
        %v1394 = vadd.f32 %v1154, %v1393
        %v1395 = vpop.f32.mrb[0].mxu0
        %1396 = vmatprep.mubr.f32.mxu0 0.0
        %1397 = vmatmul.mubr.f32.gmra.mrb[0].mxu0 %v1205
        %v1398 = vpop.f32.mrb[0].mxu0
        %v1399 = vadd.f32 %v1154, %v1398
        %v1400 = vpop.f32.mrb[0].mxu0
        %1401 = vmatprep.mubr.f32.mxu0 0.0
        %1402 = vmatmul.mubr.f32.gmra.mrb[0].mxu0 %v1208
        %v1403 = vpop.f32.mrb[0].mxu0
        %v1404 = vadd.f32 %v1154, %v1403
        %v1405 = vpop.f32.mrb[0].mxu0
        %1406 = vmatprep.mubr.f32.mxu0 0.0
        %1407 = vmatmul.mubr.f32.gmra.mrb[0].mxu0 %v1211
        %v1408 = vpop.f32.mrb[0].mxu0
        %v1409 = vadd.f32 %v1154, %v1408
        %v1410 = vpop.f32.mrb[0].mxu0
        %1411 = vmatprep.mubr.f32.mxu0 0.0
        %1412 = vmatmul.mubr.f32.gmra.mrb[0].mxu0 %v1214
        %v1413 = vpop.f32.mrb[0].mxu0
        %v1414 = vadd.f32 %v1154, %v1413
        %v1415 = vpop.f32.mrb[0].mxu0
        %1416 = vmatprep.mubr.f32.mxu0 0.0
        %1417 = vmatmul.mubr.f32.gmra.mrb[0].mxu0 %v1217
        %v1418 = vpop.f32.mrb[0].mxu0
        %v1419 = vadd.f32 %v1154, %v1418
        %v1420 = vpop.f32.mrb[0].mxu0
        %1421 = vmatprep.mubr.f32.mxu0 0.0
        %1422 = vmatmul.mubr.f32.gmra.mrb[0].mxu0 %v1220
        %v1423 = vpop.f32.mrb[0].mxu0
        %v1424 = vadd.f32 %v1154, %v1423
        %v1425 = vpop.f32.mrb[0].mxu0
        %1426 = vmatprep.mubr.f32.mxu0 0.0
        %1427 = vmatmul.mubr.f32.gmra.mrb[0].mxu0 %v1223
        %v1428 = vpop.f32.mrb[0].mxu0
        %v1429 = vadd.f32 %v1154, %v1428
        %v1430 = vpop.f32.mrb[0].mxu0
        %1431 = vmatprep.mubr.f32.mxu0 0.0
        %1432 = vmatmul.mubr.f32.gmra.mrb[0].mxu0 %v1226
        %v1433 = vpop.f32.mrb[0].mxu0
        %v1434 = vadd.f32 %v1154, %v1433
        %v1435 = vpop.f32.mrb[0].mxu0
        %1436 = vmatprep.mubr.f32.mxu0 0.0
        %1437 = vmatmul.mubr.f32.gmra.mrb[0].mxu0 %v1229
        %v1438 = vpop.f32.mrb[0].mxu0
        %v1439 = vadd.f32 %v1154, %v1438
        %v1440 = vpop.f32.mrb[0].mxu0
        %1441 = vmatprep.mubr.f32.mxu0 0.0
        %1442 = vmatmul.mubr.f32.gmra.mrb[0].mxu0 %v1232
        %v1443 = vpop.f32.mrb[0].mxu0
        %v1444 = vadd.f32 %v1154, %v1443
        %v1445 = vpop.f32.mrb[0].mxu0
        %1446 = vmatprep.mubr.f32.mxu0 0.0
        %1447 = vmatmul.mubr.f32.gmra.mrb[0].mxu0 %v1235
        %v1448 = vpop.f32.mrb[0].mxu0
        %v1449 = vadd.f32 %v1154, %v1448
        %v1450 = vpop.f32.mrb[0].mxu0
        %1451 = vmatprep.mubr.f32.mxu0 0.0
        %1452 = vmatmul.mubr.f32.gmra.mrb[0].mxu0 %v1238
        %v1453 = vpop.f32.mrb[0].mxu0
        %v1454 = vadd.f32 %v1154, %v1453
        %v1455 = vpop.f32.mrb[0].mxu0
        %1456 = vmatprep.mubr.f32.mxu0 0.0
        %1457 = vmatmul.mubr.f32.gmra.mrb[0].mxu0 %v1241
        %v1458 = vpop.f32.mrb[0].mxu0
        %v1459 = vadd.f32 %v1154, %v1458
        %v1460 = vpop.f32.mrb[0].mxu0
        %1461 = vmatprep.mubr.f32.mxu0 0.0
        %1462 = vmatmul.mubr.f32.gmra.mrb[0].mxu0 %v1244
        %v1463 = vpop.f32.mrb[0].mxu0
        %v1464 = vadd.f32 %v1154, %v1463
        %v1465 = vpop.f32.mrb[0].mxu0
        %1466 = vmatprep.mubr.f32.mxu0 0.0
        %1467 = vmatmul.mubr.f32.gmra.mrb[0].mxu0 %v1247
        %v1468 = vpop.f32.mrb[0].mxu0
        %v1469 = vadd.f32 %v1154, %v1468
        %v1470 = vpop.f32.mrb[0].mxu0
        %1471 = vmatprep.mubr.f32.mxu0 0.0
        %1472 = vmatmul.mubr.f32.gmra.mrb[0].mxu0 %v1250
        %v1473 = vpop.f32.mrb[0].mxu0
        %v1474 = vadd.f32 %v1154, %v1473
        %v1475 = vpop.f32.mrb[0].mxu0
        %1476 = vdwg.mxu0
        %v1477 = vld [vmem:[%s382] sm:$0xff]
        %v1478 = vld [vmem:[%s382 + $0x8] sm:$0xff]
        %v1479 = vld [vmem:[%s382 + $0x10] sm:$0xff]
        %v1480 = vld [vmem:[%s382 + $0x18] sm:$0xff]
        %v1481 = vld [vmem:[%s382 + $0x20] sm:$0xff]
        %v1482 = vld [vmem:[%s382 + $0x28] sm:$0xff]
        %v1483 = vld [vmem:[%s382 + $0x30] sm:$0xff]
        %v1484 = vld [vmem:[%s382 + $0x38] sm:$0xff]
        %v1485 = vld [vmem:[%s382 + $0x40] sm:$0xff]
        %v1486 = vld [vmem:[%s382 + $0x48] sm:$0xff]
        %v1487 = vld [vmem:[%s382 + $0x50] sm:$0xff]
        %v1488 = vld [vmem:[%s382 + $0x58] sm:$0xff]
        %v1489 = vld [vmem:[%s382 + $0x60] sm:$0xff]
        %v1490 = vld [vmem:[%s382 + $0x68] sm:$0xff]
        %v1491 = vld [vmem:[%s382 + $0x70] sm:$0xff]
        %v1492 = vld [vmem:[%s382 + $0x78] sm:$0xff]
        %v1493 = vld [vmem:[%s382 + $0x80] sm:$0xff]
        %v1494 = vld [vmem:[%s382 + $0x88] sm:$0xff]
        %v1495 = vld [vmem:[%s382 + $0x90] sm:$0xff]
        %v1496 = vld [vmem:[%s382 + $0x98] sm:$0xff]
        %v1497 = vld [vmem:[%s382 + $0xa0] sm:$0xff]
        %v1498 = vld [vmem:[%s382 + $0xa8] sm:$0xff]
        %v1499 = vld [vmem:[%s382 + $0xb0] sm:$0xff]
        %v1500 = vld [vmem:[%s382 + $0xb8] sm:$0xff]
        %v1501 = vld [vmem:[%s382 + $0xc0] sm:$0xff]
        %v1502 = vld [vmem:[%s382 + $0xc8] sm:$0xff]
        %v1503 = vld [vmem:[%s382 + $0xd0] sm:$0xff]
        %v1504 = vld [vmem:[%s382 + $0xd8] sm:$0xff]
        %v1505 = vld [vmem:[%s382 + $0xe0] sm:$0xff]
        %v1506 = vld [vmem:[%s382 + $0xe8] sm:$0xff]
        %v1507 = vld [vmem:[%s382 + $0xf0] sm:$0xff]
        %v1508 = vld [vmem:[%s382 + $0xf8] sm:$0xff]
        %v1509 = vsub.f32 %v1477, %v1319
        %v1510 = vsub.f32 %v1478, %v1324
        %v1511 = vsub.f32 %v1479, %v1329
        %v1512 = vsub.f32 %v1480, %v1334
        %v1513 = vsub.f32 %v1481, %v1339
        %v1514 = vsub.f32 %v1482, %v1344
        %v1515 = vsub.f32 %v1483, %v1349
        %v1516 = vsub.f32 %v1484, %v1354
        %v1517 = vsub.f32 %v1485, %v1359
        %v1518 = vsub.f32 %v1486, %v1364
        %v1519 = vsub.f32 %v1487, %v1369
        %v1520 = vsub.f32 %v1488, %v1374
        %v1521 = vsub.f32 %v1489, %v1379
        %v1522 = vsub.f32 %v1490, %v1384
        %v1523 = vsub.f32 %v1491, %v1389
        %v1524 = vsub.f32 %v1492, %v1394
        %v1525 = vsub.f32 %v1493, %v1399
        %v1526 = vsub.f32 %v1494, %v1404
        %v1527 = vsub.f32 %v1495, %v1409
        %v1528 = vsub.f32 %v1496, %v1414
        %v1529 = vsub.f32 %v1497, %v1419
        %v1530 = vsub.f32 %v1498, %v1424
        %v1531 = vsub.f32 %v1499, %v1429
        %v1532 = vsub.f32 %v1500, %v1434
        %v1533 = vsub.f32 %v1501, %v1439
        %v1534 = vsub.f32 %v1502, %v1444
        %v1535 = vsub.f32 %v1503, %v1449
        %v1536 = vsub.f32 %v1504, %v1454
        %v1537 = vsub.f32 %v1505, %v1459
        %v1538 = vsub.f32 %v1506, %v1464
        %v1539 = vsub.f32 %v1507, %v1469
        %v1540 = vsub.f32 %v1508, %v1474
        %v1541 = vld [vmem:[%s8] sm:$0x1]
        %v1543 = vlaneseq
        %v1544 = vshrl.u32 %v1543, 7
        %v1545 = vsub.s32 0, %v1544
        %v1546 = vrot.slane %v1541, %v1545
        %v1548 = vmul.f32 %v1509, %v1546
        %v1549 = vmul.f32 %v1510, %v1546
        %v1550 = vmul.f32 %v1511, %v1546
        %v1551 = vmul.f32 %v1512, %v1546
        %v1552 = vmul.f32 %v1513, %v1546
        %v1553 = vmul.f32 %v1514, %v1546
        %v1554 = vmul.f32 %v1515, %v1546
        %v1555 = vmul.f32 %v1516, %v1546
        %v1556 = vmul.f32 %v1517, %v1546
        %v1557 = vmul.f32 %v1518, %v1546
        %v1558 = vmul.f32 %v1519, %v1546
        %v1559 = vmul.f32 %v1520, %v1546
        %v1560 = vmul.f32 %v1521, %v1546
        %v1561 = vmul.f32 %v1522, %v1546
        %v1562 = vmul.f32 %v1523, %v1546
        %v1563 = vmul.f32 %v1524, %v1546
        %v1564 = vmul.f32 %v1525, %v1546
        %v1565 = vmul.f32 %v1526, %v1546
        %v1566 = vmul.f32 %v1527, %v1546
        %v1567 = vmul.f32 %v1528, %v1546
        %v1568 = vmul.f32 %v1529, %v1546
        %v1569 = vmul.f32 %v1530, %v1546
        %v1570 = vmul.f32 %v1531, %v1546
        %v1571 = vmul.f32 %v1532, %v1546
        %v1572 = vmul.f32 %v1533, %v1546
        %v1573 = vmul.f32 %v1534, %v1546
        %v1574 = vmul.f32 %v1535, %v1546
        %v1575 = vmul.f32 %v1536, %v1546
        %v1576 = vmul.f32 %v1537, %v1546
        %v1577 = vmul.f32 %v1538, %v1546
        %v1578 = vmul.f32 %v1539, %v1546
        %v1579 = vmul.f32 %v1540, %v1546
        %v1580 = vmul.f32 %v1548, %v1548
        %v1581 = vmul.f32 %v1549, %v1549
        %v1582 = vmul.f32 %v1550, %v1550
        %v1583 = vmul.f32 %v1551, %v1551
        %v1584 = vmul.f32 %v1552, %v1552
        %v1585 = vmul.f32 %v1553, %v1553
        %v1586 = vmul.f32 %v1554, %v1554
        %v1587 = vmul.f32 %v1555, %v1555
        %v1588 = vmul.f32 %v1556, %v1556
        %v1589 = vmul.f32 %v1557, %v1557
        %v1590 = vmul.f32 %v1558, %v1558
        %v1591 = vmul.f32 %v1559, %v1559
        %v1592 = vmul.f32 %v1560, %v1560
        %v1593 = vmul.f32 %v1561, %v1561
        %v1594 = vmul.f32 %v1562, %v1562
        %v1595 = vmul.f32 %v1563, %v1563
        %v1596 = vmul.f32 %v1564, %v1564
        %v1597 = vmul.f32 %v1565, %v1565
        %v1598 = vmul.f32 %v1566, %v1566
        %v1599 = vmul.f32 %v1567, %v1567
        %v1600 = vmul.f32 %v1568, %v1568
        %v1601 = vmul.f32 %v1569, %v1569
        %v1602 = vmul.f32 %v1570, %v1570
        %v1603 = vmul.f32 %v1571, %v1571
        %v1604 = vmul.f32 %v1572, %v1572
        %v1605 = vmul.f32 %v1573, %v1573
        %v1606 = vmul.f32 %v1574, %v1574
        %v1607 = vmul.f32 %v1575, %v1575
        %v1608 = vmul.f32 %v1576, %v1576
        %v1609 = vmul.f32 %v1577, %v1577
        %v1610 = vmul.f32 %v1578, %v1578
        %v1611 = vmul.f32 %v1579, %v1579
        %vm1612 = vcmask 64512
        %v1613 = vsel %vm1612, %v1580, 0.0
        %1614 = vadd.xlane.f32.xlu0 %v1613
        %v1615 = vpop.xlane.xlu0 %1614
        %v1616 = vsel %vm1612, %v1581, 0.0
        %1617 = vadd.xlane.f32.xlu0 %v1616
        %v1618 = vpop.xlane.xlu0 %1617
        %v1619 = vsel %vm1612, %v1582, 0.0
        %1620 = vadd.xlane.f32.xlu0 %v1619
        %v1621 = vpop.xlane.xlu0 %1620
        %v1622 = vsel %vm1612, %v1583, 0.0
        %1623 = vadd.xlane.f32.xlu0 %v1622
        %v1624 = vpop.xlane.xlu0 %1623
        %v1625 = vsel %vm1612, %v1584, 0.0
        %1626 = vadd.xlane.f32.xlu0 %v1625
        %v1627 = vpop.xlane.xlu0 %1626
        %v1628 = vsel %vm1612, %v1585, 0.0
        %1629 = vadd.xlane.f32.xlu0 %v1628
        %v1630 = vpop.xlane.xlu0 %1629
        %v1631 = vsel %vm1612, %v1586, 0.0
        %1632 = vadd.xlane.f32.xlu0 %v1631
        %v1633 = vpop.xlane.xlu0 %1632
        %v1634 = vsel %vm1612, %v1587, 0.0
        %1635 = vadd.xlane.f32.xlu0 %v1634
        %v1636 = vpop.xlane.xlu0 %1635
        %v1637 = vsel %vm1612, %v1588, 0.0
        %1638 = vadd.xlane.f32.xlu0 %v1637
        %v1639 = vpop.xlane.xlu0 %1638
        %v1640 = vsel %vm1612, %v1589, 0.0
        %1641 = vadd.xlane.f32.xlu0 %v1640
        %v1642 = vpop.xlane.xlu0 %1641
        %v1643 = vsel %vm1612, %v1590, 0.0
        %1644 = vadd.xlane.f32.xlu0 %v1643
        %v1645 = vpop.xlane.xlu0 %1644
        %v1646 = vsel %vm1612, %v1591, 0.0
        %1647 = vadd.xlane.f32.xlu0 %v1646
        %v1648 = vpop.xlane.xlu0 %1647
        %v1649 = vsel %vm1612, %v1592, 0.0
        %1650 = vadd.xlane.f32.xlu0 %v1649
        %v1651 = vpop.xlane.xlu0 %1650
        %v1652 = vsel %vm1612, %v1593, 0.0
        %1653 = vadd.xlane.f32.xlu0 %v1652
        %v1654 = vpop.xlane.xlu0 %1653
        %v1655 = vsel %vm1612, %v1594, 0.0
        %1656 = vadd.xlane.f32.xlu0 %v1655
        %v1657 = vpop.xlane.xlu0 %1656
        %v1658 = vsel %vm1612, %v1595, 0.0
        %1659 = vadd.xlane.f32.xlu0 %v1658
        %v1660 = vpop.xlane.xlu0 %1659
        %v1661 = vsel %vm1612, %v1596, 0.0
        %1662 = vadd.xlane.f32.xlu0 %v1661
        %v1663 = vpop.xlane.xlu0 %1662
        %v1664 = vsel %vm1612, %v1597, 0.0
        %1665 = vadd.xlane.f32.xlu0 %v1664
        %v1666 = vpop.xlane.xlu0 %1665
        %v1667 = vsel %vm1612, %v1598, 0.0
        %1668 = vadd.xlane.f32.xlu0 %v1667
        %v1669 = vpop.xlane.xlu0 %1668
        %v1670 = vsel %vm1612, %v1599, 0.0
        %1671 = vadd.xlane.f32.xlu0 %v1670
        %v1672 = vpop.xlane.xlu0 %1671
        %v1673 = vsel %vm1612, %v1600, 0.0
        %1674 = vadd.xlane.f32.xlu0 %v1673
        %v1675 = vpop.xlane.xlu0 %1674
        %v1676 = vsel %vm1612, %v1601, 0.0
        %1677 = vadd.xlane.f32.xlu0 %v1676
        %v1678 = vpop.xlane.xlu0 %1677
        %v1679 = vsel %vm1612, %v1602, 0.0
        %1680 = vadd.xlane.f32.xlu0 %v1679
        %v1681 = vpop.xlane.xlu0 %1680
        %v1682 = vsel %vm1612, %v1603, 0.0
        %1683 = vadd.xlane.f32.xlu0 %v1682
        %v1684 = vpop.xlane.xlu0 %1683
        %v1685 = vsel %vm1612, %v1604, 0.0
        %1686 = vadd.xlane.f32.xlu0 %v1685
        %v1687 = vpop.xlane.xlu0 %1686
        %v1688 = vsel %vm1612, %v1605, 0.0
        %1689 = vadd.xlane.f32.xlu0 %v1688
        %v1690 = vpop.xlane.xlu0 %1689
        %v1691 = vsel %vm1612, %v1606, 0.0
        %1692 = vadd.xlane.f32.xlu0 %v1691
        %v1693 = vpop.xlane.xlu0 %1692
        %v1694 = vsel %vm1612, %v1607, 0.0
        %1695 = vadd.xlane.f32.xlu0 %v1694
        %v1696 = vpop.xlane.xlu0 %1695
        %v1697 = vsel %vm1612, %v1608, 0.0
        %1698 = vadd.xlane.f32.xlu0 %v1697
        %v1699 = vpop.xlane.xlu0 %1698
        %v1700 = vsel %vm1612, %v1609, 0.0
        %1701 = vadd.xlane.f32.xlu0 %v1700
        %v1702 = vpop.xlane.xlu0 %1701
        %v1703 = vsel %vm1612, %v1610, 0.0
        %1704 = vadd.xlane.f32.xlu0 %v1703
        %v1705 = vpop.xlane.xlu0 %1704
        %v1706 = vsel %vm1612, %v1611, 0.0
        %1707 = vadd.xlane.f32.xlu0 %v1706
        %v1708 = vpop.xlane.xlu0 %1707
        %v1709 = vmul.f32 %v1615, -0.5
        %v1710 = vmul.f32 %v1618, -0.5
        %v1711 = vmul.f32 %v1621, -0.5
        %v1712 = vmul.f32 %v1624, -0.5
        %v1713 = vmul.f32 %v1627, -0.5
        %v1714 = vmul.f32 %v1630, -0.5
        %v1715 = vmul.f32 %v1633, -0.5
        %v1716 = vmul.f32 %v1636, -0.5
        %v1717 = vmul.f32 %v1639, -0.5
        %v1718 = vmul.f32 %v1642, -0.5
        %v1719 = vmul.f32 %v1645, -0.5
        %v1720 = vmul.f32 %v1648, -0.5
        %v1721 = vmul.f32 %v1651, -0.5
        %v1722 = vmul.f32 %v1654, -0.5
        %v1723 = vmul.f32 %v1657, -0.5
        %v1724 = vmul.f32 %v1660, -0.5
        %v1725 = vmul.f32 %v1663, -0.5
        %v1726 = vmul.f32 %v1666, -0.5
        %v1727 = vmul.f32 %v1669, -0.5
        %v1728 = vmul.f32 %v1672, -0.5
        %v1729 = vmul.f32 %v1675, -0.5
        %v1730 = vmul.f32 %v1678, -0.5
        %v1731 = vmul.f32 %v1681, -0.5
        %v1732 = vmul.f32 %v1684, -0.5
        %v1733 = vmul.f32 %v1687, -0.5
        %v1734 = vmul.f32 %v1690, -0.5
        %v1735 = vmul.f32 %v1693, -0.5
        %v1736 = vmul.f32 %v1696, -0.5
        %v1737 = vmul.f32 %v1699, -0.5
        %v1738 = vmul.f32 %v1702, -0.5
        %v1739 = vmul.f32 %v1705, -0.5
        %v1740 = vmul.f32 %v1708, -0.5
        %v1741 = vld [vmem:[#allocation2] sm:$0x1]
        %v1743 = vlaneseq
        %v1744 = vshrl.u32 %v1743, 7
        %v1745 = vsub.s32 0, %v1744
        %v1746 = vrot.slane %v1741, %v1745
        %v1748 = vadd.f32 %v1709, %v1746
        %v1749 = vadd.f32 %v1710, %v1746
        %v1750 = vadd.f32 %v1711, %v1746
        %v1751 = vadd.f32 %v1712, %v1746
        %v1752 = vadd.f32 %v1713, %v1746
        %v1753 = vadd.f32 %v1714, %v1746
        %v1754 = vadd.f32 %v1715, %v1746
        %v1755 = vadd.f32 %v1716, %v1746
        %v1756 = vadd.f32 %v1717, %v1746
        %v1757 = vadd.f32 %v1718, %v1746
        %v1758 = vadd.f32 %v1719, %v1746
        %v1759 = vadd.f32 %v1720, %v1746
        %v1760 = vadd.f32 %v1721, %v1746
        %v1761 = vadd.f32 %v1722, %v1746
        %v1762 = vadd.f32 %v1723, %v1746
        %v1763 = vadd.f32 %v1724, %v1746
        %v1764 = vadd.f32 %v1725, %v1746
        %v1765 = vadd.f32 %v1726, %v1746
        %v1766 = vadd.f32 %v1727, %v1746
        %v1767 = vadd.f32 %v1728, %v1746
        %v1768 = vadd.f32 %v1729, %v1746
        %v1769 = vadd.f32 %v1730, %v1746
        %v1770 = vadd.f32 %v1731, %v1746
        %v1771 = vadd.f32 %v1732, %v1746
        %v1772 = vadd.f32 %v1733, %v1746
        %v1773 = vadd.f32 %v1734, %v1746
        %v1774 = vadd.f32 %v1735, %v1746
        %v1775 = vadd.f32 %v1736, %v1746
        %v1776 = vadd.f32 %v1737, %v1746
        %v1777 = vadd.f32 %v1738, %v1746
        %v1778 = vadd.f32 %v1739, %v1746
        %v1779 = vadd.f32 %v1740, %v1746
        %v1780 = vlaneseq
        %v1781 = vand.u32 %v1780, 127
        %vm1782 = vcmp.eq.s32.totalorder %v1781, 8
        %v1783 = vsel %vm1782, 1.0, 0.0
        %1785 = vset.pattern.permute.xlu0 0
        %1786 = vperm.xlu0 %1785, %v1748
        %v1787 = vpop.permute.xlu0 %1786
        %1790 = vset.pattern.permute.xlu0 0
        %1791 = vperm.xlu0 %1790, %v1749
        %v1792 = vpop.permute.xlu0 %1791
        %1795 = vset.pattern.permute.xlu0 0
        %1796 = vperm.xlu0 %1795, %v1750
        %v1797 = vpop.permute.xlu0 %1796
        %1800 = vset.pattern.permute.xlu0 0
        %1801 = vperm.xlu0 %1800, %v1751
        %v1802 = vpop.permute.xlu0 %1801
        %1805 = vset.pattern.permute.xlu0 0
        %1806 = vperm.xlu0 %1805, %v1752
        %v1807 = vpop.permute.xlu0 %1806
        %1810 = vset.pattern.permute.xlu0 0
        %1811 = vperm.xlu0 %1810, %v1753
        %v1812 = vpop.permute.xlu0 %1811
        %1815 = vset.pattern.permute.xlu0 0
        %1816 = vperm.xlu0 %1815, %v1754
        %v1817 = vpop.permute.xlu0 %1816
        %1820 = vset.pattern.permute.xlu0 0
        %1821 = vperm.xlu0 %1820, %v1755
        %v1822 = vpop.permute.xlu0 %1821
        %1825 = vset.pattern.permute.xlu0 0
        %1826 = vperm.xlu0 %1825, %v1756
        %v1827 = vpop.permute.xlu0 %1826
        %1830 = vset.pattern.permute.xlu0 0
        %1831 = vperm.xlu0 %1830, %v1757
        %v1832 = vpop.permute.xlu0 %1831
        %1835 = vset.pattern.permute.xlu0 0
        %1836 = vperm.xlu0 %1835, %v1758
        %v1837 = vpop.permute.xlu0 %1836
        %1840 = vset.pattern.permute.xlu0 0
        %1841 = vperm.xlu0 %1840, %v1759
        %v1842 = vpop.permute.xlu0 %1841
        %1845 = vset.pattern.permute.xlu0 0
        %1846 = vperm.xlu0 %1845, %v1760
        %v1847 = vpop.permute.xlu0 %1846
        %1850 = vset.pattern.permute.xlu0 0
        %1851 = vperm.xlu0 %1850, %v1761
        %v1852 = vpop.permute.xlu0 %1851
        %1855 = vset.pattern.permute.xlu0 0
        %1856 = vperm.xlu0 %1855, %v1762
        %v1857 = vpop.permute.xlu0 %1856
        %1860 = vset.pattern.permute.xlu0 0
        %1861 = vperm.xlu0 %1860, %v1763
        %v1862 = vpop.permute.xlu0 %1861
        %1865 = vset.pattern.permute.xlu0 0
        %1866 = vperm.xlu0 %1865, %v1764
        %v1867 = vpop.permute.xlu0 %1866
        %1870 = vset.pattern.permute.xlu0 0
        %1871 = vperm.xlu0 %1870, %v1765
        %v1872 = vpop.permute.xlu0 %1871
        %1875 = vset.pattern.permute.xlu0 0
        %1876 = vperm.xlu0 %1875, %v1766
        %v1877 = vpop.permute.xlu0 %1876
        %1880 = vset.pattern.permute.xlu0 0
        %1881 = vperm.xlu0 %1880, %v1767
        %v1882 = vpop.permute.xlu0 %1881
        %1885 = vset.pattern.permute.xlu0 0
        %1886 = vperm.xlu0 %1885, %v1768
        %v1887 = vpop.permute.xlu0 %1886
        %1890 = vset.pattern.permute.xlu0 0
        %1891 = vperm.xlu0 %1890, %v1769
        %v1892 = vpop.permute.xlu0 %1891
        %1895 = vset.pattern.permute.xlu0 0
        %1896 = vperm.xlu0 %1895, %v1770
        %v1897 = vpop.permute.xlu0 %1896
        %1900 = vset.pattern.permute.xlu0 0
        %1901 = vperm.xlu0 %1900, %v1771
        %v1902 = vpop.permute.xlu0 %1901
        %1905 = vset.pattern.permute.xlu0 0
        %1906 = vperm.xlu0 %1905, %v1772
        %v1907 = vpop.permute.xlu0 %1906
        %1910 = vset.pattern.permute.xlu0 0
        %1911 = vperm.xlu0 %1910, %v1773
        %v1912 = vpop.permute.xlu0 %1911
        %1915 = vset.pattern.permute.xlu0 0
        %1916 = vperm.xlu0 %1915, %v1774
        %v1917 = vpop.permute.xlu0 %1916
        %1920 = vset.pattern.permute.xlu0 0
        %1921 = vperm.xlu0 %1920, %v1775
        %v1922 = vpop.permute.xlu0 %1921
        %1925 = vset.pattern.permute.xlu0 0
        %1926 = vperm.xlu0 %1925, %v1776
        %v1927 = vpop.permute.xlu0 %1926
        %1930 = vset.pattern.permute.xlu0 0
        %1931 = vperm.xlu0 %1930, %v1777
        %v1932 = vpop.permute.xlu0 %1931
        %1935 = vset.pattern.permute.xlu0 0
        %1936 = vperm.xlu0 %1935, %v1778
        %v1937 = vpop.permute.xlu0 %1936
        %1940 = vset.pattern.permute.xlu0 0
        %1941 = vperm.xlu0 %1940, %v1779
        %v1942 = vpop.permute.xlu0 %1941
        %v1944 = vmul.f32 %v1787, %v1783
        %v1945 = vmul.f32 %v1792, %v1783
        %v1946 = vmul.f32 %v1797, %v1783
        %v1947 = vmul.f32 %v1802, %v1783
        %v1948 = vmul.f32 %v1807, %v1783
        %v1949 = vmul.f32 %v1812, %v1783
        %v1950 = vmul.f32 %v1817, %v1783
        %v1951 = vmul.f32 %v1822, %v1783
        %v1952 = vmul.f32 %v1827, %v1783
        %v1953 = vmul.f32 %v1832, %v1783
        %v1954 = vmul.f32 %v1837, %v1783
        %v1955 = vmul.f32 %v1842, %v1783
        %v1956 = vmul.f32 %v1847, %v1783
        %v1957 = vmul.f32 %v1852, %v1783
        %v1958 = vmul.f32 %v1857, %v1783
        %v1959 = vmul.f32 %v1862, %v1783
        %v1960 = vmul.f32 %v1867, %v1783
        %v1961 = vmul.f32 %v1872, %v1783
        %v1962 = vmul.f32 %v1877, %v1783
        %v1963 = vmul.f32 %v1882, %v1783
        %v1964 = vmul.f32 %v1887, %v1783
        %v1965 = vmul.f32 %v1892, %v1783
        %v1966 = vmul.f32 %v1897, %v1783
        %v1967 = vmul.f32 %v1902, %v1783
        %v1968 = vmul.f32 %v1907, %v1783
        %v1969 = vmul.f32 %v1912, %v1783
        %v1970 = vmul.f32 %v1917, %v1783
        %v1971 = vmul.f32 %v1922, %v1783
        %v1972 = vmul.f32 %v1927, %v1783
        %v1973 = vmul.f32 %v1932, %v1783
        %v1974 = vmul.f32 %v1937, %v1783
        %v1975 = vmul.f32 %v1942, %v1783
        %v1976 = vadd.f32 %v1319, %v1944
        %v1977 = vadd.f32 %v1324, %v1945
        %v1978 = vadd.f32 %v1329, %v1946
        %v1979 = vadd.f32 %v1334, %v1947
        %v1980 = vadd.f32 %v1339, %v1948
        %v1981 = vadd.f32 %v1344, %v1949
        %v1982 = vadd.f32 %v1349, %v1950
        %v1983 = vadd.f32 %v1354, %v1951
        %v1984 = vadd.f32 %v1359, %v1952
        %v1985 = vadd.f32 %v1364, %v1953
        %v1986 = vadd.f32 %v1369, %v1954
        %v1987 = vadd.f32 %v1374, %v1955
        %v1988 = vadd.f32 %v1379, %v1956
        %v1989 = vadd.f32 %v1384, %v1957
        %v1990 = vadd.f32 %v1389, %v1958
        %v1991 = vadd.f32 %v1394, %v1959
        %v1992 = vadd.f32 %v1399, %v1960
        %v1993 = vadd.f32 %v1404, %v1961
        %v1994 = vadd.f32 %v1409, %v1962
        %v1995 = vadd.f32 %v1414, %v1963
        %v1996 = vadd.f32 %v1419, %v1964
        %v1997 = vadd.f32 %v1424, %v1965
        %v1998 = vadd.f32 %v1429, %v1966
        %v1999 = vadd.f32 %v1434, %v1967
        %v2000 = vadd.f32 %v1439, %v1968
        %v2001 = vadd.f32 %v1444, %v1969
        %v2002 = vadd.f32 %v1449, %v1970
        %v2003 = vadd.f32 %v1454, %v1971
        %v2004 = vadd.f32 %v1459, %v1972
        %v2005 = vadd.f32 %v1464, %v1973
        %v2006 = vadd.f32 %v1469, %v1974
        %v2007 = vadd.f32 %v1474, %v1975
        %2008 = vst [vmem:[%s371] sm:$0xff] %v1976
        %2009 = vst [vmem:[%s371 + $0x8] sm:$0xff] %v1977
        %2010 = vst [vmem:[%s371 + $0x10] sm:$0xff] %v1978
        %2011 = vst [vmem:[%s371 + $0x18] sm:$0xff] %v1979
        %2012 = vst [vmem:[%s371 + $0x20] sm:$0xff] %v1980
        %2013 = vst [vmem:[%s371 + $0x28] sm:$0xff] %v1981
        %2014 = vst [vmem:[%s371 + $0x30] sm:$0xff] %v1982
        %2015 = vst [vmem:[%s371 + $0x38] sm:$0xff] %v1983
        %2016 = vst [vmem:[%s371 + $0x40] sm:$0xff] %v1984
        %2017 = vst [vmem:[%s371 + $0x48] sm:$0xff] %v1985
        %2018 = vst [vmem:[%s371 + $0x50] sm:$0xff] %v1986
        %2019 = vst [vmem:[%s371 + $0x58] sm:$0xff] %v1987
        %2020 = vst [vmem:[%s371 + $0x60] sm:$0xff] %v1988
        %2021 = vst [vmem:[%s371 + $0x68] sm:$0xff] %v1989
        %2022 = vst [vmem:[%s371 + $0x70] sm:$0xff] %v1990
        %2023 = vst [vmem:[%s371 + $0x78] sm:$0xff] %v1991
        %2024 = vst [vmem:[%s371 + $0x80] sm:$0xff] %v1992
        %2025 = vst [vmem:[%s371 + $0x88] sm:$0xff] %v1993
        %2026 = vst [vmem:[%s371 + $0x90] sm:$0xff] %v1994
        %2027 = vst [vmem:[%s371 + $0x98] sm:$0xff] %v1995
        %2028 = vst [vmem:[%s371 + $0xa0] sm:$0xff] %v1996
        %2029 = vst [vmem:[%s371 + $0xa8] sm:$0xff] %v1997
        %2030 = vst [vmem:[%s371 + $0xb0] sm:$0xff] %v1998
        %2031 = vst [vmem:[%s371 + $0xb8] sm:$0xff] %v1999
        %2032 = vst [vmem:[%s371 + $0xc0] sm:$0xff] %v2000
        %2033 = vst [vmem:[%s371 + $0xc8] sm:$0xff] %v2001
        %2034 = vst [vmem:[%s371 + $0xd0] sm:$0xff] %v2002
        %2035 = vst [vmem:[%s371 + $0xd8] sm:$0xff] %v2003
        %2036 = vst [vmem:[%s371 + $0xe0] sm:$0xff] %v2004
        %2037 = vst [vmem:[%s371 + $0xe8] sm:$0xff] %v2005
        %2038 = vst [vmem:[%s371 + $0xf0] sm:$0xff] %v2006
        %2039 = vst [vmem:[%s371 + $0xf8] sm:$0xff] %v2007
        %s2040 = sand.u32 %s254, 1
        %s2041 = scalar_lea.sflag [#allocation4], %s2040
        %s2042 = sand.u32 %s254, 1
        %s2043 = smul.addr %s2042, 256
        %s2044 = scalar_lea.vmem [#allocation3], %s2043
        // Predicated region
        $region61: #{tpu_custom_call.1} parent=59 // pred_check
          %p2045 = pneg %p264
        $region62: #{tpu_custom_call.1} parent=59 // pred_check_branch
          %2047 = sbr.rel (%p2045) target = $region64
        $region63: #{tpu_custom_call.1} parent=59 // pred_region
          %s2048 = smul.u32 32, %s26
          %s2050 = ssub.s32 4096, 4096
          %2051 = vsyncadd %s2041, %s2050
          %s2052 = smul.addr %s2048, 128
          %s2053 = scalar_lea.hbm %s10, %s2052
          %s2054 = sshll.u32 %s2044, 4
          %s2055 = int_to_ptr.vmem [resolvable:$true] %s2054
          %2060 = dma.vmem_to_hbm [thread:$0]  %s2055, 4096, %s2053, %s2041, 128, 128, 8
        $region64: #{tpu_custom_call.1} parent=59 // pred_fallthru
          _
      $region60: #{tpu_custom_call.1} parent=5 // pred_fallthru
        _
      %p2061 = scmp.le.s32.totalorder 2, %s21
      // Predicated region
      $region65: #{tpu_custom_call.1} parent=5 // pred_check
        %p2062 = pneg %p2061
      $region66: #{tpu_custom_call.1} parent=5 // pred_check_branch
        %2064 = sbr.rel (%p2062) target = $region68
      $region67: #{tpu_custom_call.1} parent=5 // pred_region
        %s2065 = ssub.s32 %s21, 2
        // Predicated region
        $region69: #{tpu_custom_call.1} parent=67 // pred_check
          %p2066 = pneg %p270
        $region70: #{tpu_custom_call.1} parent=67 // pred_check_branch
          %2068 = sbr.rel (%p2066) target = $region72
        $region71: #{tpu_custom_call.1} parent=67 // pred_region
          %s2069 = sand.u32 %s255, 1
          %s2070 = scalar_lea.sflag [#allocation4], %s2069
          %s2071 = sand.u32 %s255, 1
          %s2072 = smul.addr %s2071, 256
          %s2073 = scalar_lea.vmem [#allocation3], %s2072
          %2074 = dma.done %s2070, 4096
        $region72: #{tpu_custom_call.1} parent=67 // pred_fallthru
          _
      $region68: #{tpu_custom_call.1} parent=5 // pred_fallthru
        _
    $region6: #{tpu_custom_call.1} parent=1 // loop_footer
      %s25 = sadd.s32 1, %s21
    $region7: #{tpu_custom_call.1} parent=1 // loop_footer_branch
      %20 = sbr.rel target = $region3
    $region8: #{tpu_custom_call.1} parent=1 // loop_exit
      _
    %2075 = vsyncpa [#allocation4], 1
    %s2076 = scalar_lea.sflag [#allocation4], 1
    %2077 = vsyncpa %s2076, 1

</llo_original>
